<compile_context>
chip_gen: v5e
topology: v5e:2x2
jax: 0.10.0
libtpu: 0.0.40
codegen_flags: <defaults>
</compile_context>

<pallas_src>
import math
import functools

import jax
import jax.numpy as jnp
from jax.experimental import pallas as pl
from jax.experimental.pallas import tpu as pltpu


# ----------------------------------------------------------------------------
# Pallas kernel: TB batch elements per grid step
# ----------------------------------------------------------------------------
def decoder_kernel(last_emb_ref,   # (TB, G, H) gathered last-node embeddings
                   emb_ref,        # (TB, N, H) raw embeddings (K/V source + logit keys)
                   mask_ref,       # (TB, G, N) group_ninf_mask (0 / -inf), f32
                   wq_ref,         # (H, H)  (Wq_first + Wq_last)^T   (step-0 semantics)
                   wqg_ref,        # (H, H)  Wq_graph^T
                   wk_ref,         # (H, H)  Wk^T
                   wv_ref,         # (H, H)  Wv^T
                   wm_ref,         # (H, H)  multi_head_combine^T
                   bias_ref,       # (1, H)  multi_head_combine bias
                   probs_ref,      # (TB, G, N) output probabilities
                   *, n_heads, tanh_clipping):
    TB, G, H = last_emb_ref.shape
    N = emb_ref.shape[1]
    d = H // n_heads
    scale = 1.0 / math.sqrt(d)

    emb = emb_ref[...]                                   # (TB, N, H)
    mask = mask_ref[...]                                 # (TB, G, N) f32

    # Flatten batch into rows so the projection matmuls fill the MXU.
    emb2d = emb.reshape(TB * N, H)                       # (TB*N, H)
    last2d = last_emb_ref[...].reshape(TB * G, H)        # (TB*G, H)

    # ---- fused reset(): graph query + K / V projections from resident emb ----
    graph = jnp.mean(emb.astype(jnp.float32), axis=1)    # (TB, H)
    q_graph = jnp.dot(graph.astype(emb.dtype), wqg_ref[...],
                      preferred_element_type=jnp.float32)          # (TB, H)
    k = jnp.dot(emb2d, wk_ref[...],
                preferred_element_type=jnp.float32).reshape(TB, N, H)
    v = jnp.dot(emb2d, wv_ref[...],
                preferred_element_type=jnp.float32).reshape(TB, N, H)

    # glimpse query: Wq_first + Wq_last folded into one weight (step == 0
    # semantics: both act on the last-node embedding), plus the graph query.
    q = jnp.dot(last2d, wq_ref[...],
                preferred_element_type=jnp.float32).reshape(TB, G, H)
    q = q + q_graph[:, None, :]                          # (TB, G, H)

    # ---- multi-head attention, combine projection absorbed per head ----
    # heads are contiguous H-slices (matches utils.make_heads); no transposes,
    # no lane-axis concatenation of head outputs.
    wm = wm_ref[...]                                     # (H, H)
    acc = jnp.zeros((TB * G, H), jnp.float32)
    for h in range(n_heads):
        lo = h * d
        qh = q[:, :, lo:lo + d]                          # (TB, G, d)
        kh = k[:, :, lo:lo + d]                          # (TB, N, d)
        vh = v[:, :, lo:lo + d]                          # (TB, N, d)
        s = jnp.einsum('bgd,bnd->bgn', qh, kh,
                       preferred_element_type=jnp.float32) * scale + mask
        s = s - jnp.max(s, axis=-1, keepdims=True)
        p = jnp.exp(s)
        p = p / jnp.sum(p, axis=-1, keepdims=True)
        oh = jnp.einsum('bgn,bnd->bgd', p.astype(vh.dtype), vh,
                        preferred_element_type=jnp.float32)        # (TB, G, d)
        acc = acc + jnp.dot(oh.reshape(TB * G, d), wm[lo:lo + d, :],
                            preferred_element_type=jnp.float32)    # (TB*G, H)

    final_q = (acc + bias_ref[...]).reshape(TB, G, H)    # (TB, G, H) f32

    # ---- single-head logits + tanh clipping + mask + softmax ----
    logits = jnp.einsum('bgh,bnh->bgn', final_q.astype(emb.dtype), emb,
                        preferred_element_type=jnp.float32)        # (TB, G, N)
    score = jnp.tanh(logits) * tanh_clipping + mask
    score = score - jnp.max(score, axis=-1, keepdims=True)
    e = jnp.exp(score)
    probs_ref[...] = (e / jnp.sum(e, axis=-1, keepdims=True)).astype(probs_ref.dtype)


# ----------------------------------------------------------------------------
# One-time parameter prep (hoists weight transposes / bias reshape)
# ----------------------------------------------------------------------------
def prepare_decoder_params(params, compute_dtype=jnp.float32):
    Wqg, Wqf, Wql, Wk, Wv, Wm, bm = params
    cd = compute_dtype
    # TODO(synk): caching of q_first across decode steps (step > 0) is not
    # modeled; here Wq_first and Wq_last are folded since both consume the
    # same last-node embedding at step 0 (matches the reference forward).
    return {
        "wq_t":  (Wqf + Wql).T.astype(cd),
        "wqg_t": Wqg.T.astype(cd),
        "wk_t":  Wk.T.astype(cd),
        "wv_t":  Wv.T.astype(cd),
        "wm_t":  Wm.T.astype(cd),
        "bias":  bm[None, :].astype(jnp.float32),
    }


def _pick_batch_tile(B, G, N, H, itemsize, target=64, vmem_budget=8 << 20):
    # double-buffered in/out blocks + rough f32 in-kernel intermediates per elem
    per_elem = (2 * itemsize * (G * H + N * H + 2 * G * N)
                + 4 * (2 * G * H + 2 * N * H + 4 * G * N))
    tb = int(max(1, min(B, target, vmem_budget // max(per_elem, 1))))
    while B % tb:
        tb -= 1
    return tb


# ----------------------------------------------------------------------------
# Wrapper: gather glue + pallas_call
# ----------------------------------------------------------------------------
def decoder_forward(last_node, group_ninf_mask, embeddings, prepped, *,
                    n_heads=8, tanh_clipping=10.0,
                    compute_dtype=jnp.float32, batch_tile=64):
    B, N, H = embeddings.shape
    G = group_ninf_mask.shape[1]

    emb = embeddings.astype(compute_dtype)
    # last-node gather (glue); K/V/graph projections are fused into the kernel.
    idx = jnp.broadcast_to(last_node[:, :, None], (B, G, H))
    last_emb = jnp.take_along_axis(emb, idx, axis=1)                 # (B, G, H)
    mask = group_ninf_mask.astype(jnp.float32)

    # TODO(synk): `n_decoding_neighbors` k-NN masking path (cdist + topk +
    # scatter) is not implemented; the attribute is never set in __init__, so
    # the else-branch (glimpse_mask = group_ninf_mask) is reproduced here.

    TB = _pick_batch_tile(B, G, N, H, jnp.dtype(compute_dtype).itemsize,
                          target=batch_tile)

    kernel = functools.partial(decoder_kernel,
                               n_heads=n_heads, tanh_clipping=tanh_clipping)

    bmap = lambda i: (i, 0, 0)     # batch-blocked tensors
    wmap = lambda i: (0, 0)        # shared weights (re-used across grid steps)

    return pl.pallas_call(
        kernel,
        out_shape=jax.ShapeDtypeStruct((B, G, N), jnp.float32),
        grid=(B // TB,),
        in_specs=[
            pl.BlockSpec((TB, G, H), bmap),   # last_emb
            pl.BlockSpec((TB, N, H), bmap),   # embeddings
            pl.BlockSpec((TB, G, N), bmap),   # group_ninf_mask
            pl.BlockSpec((H, H), wmap),       # (Wq_first + Wq_last)^T
            pl.BlockSpec((H, H), wmap),       # Wq_graph^T
            pl.BlockSpec((H, H), wmap),       # Wk^T
            pl.BlockSpec((H, H), wmap),       # Wv^T
            pl.BlockSpec((H, H), wmap),       # combine W^T
            pl.BlockSpec((1, H), wmap),       # combine bias
        ],
        out_specs=pl.BlockSpec((TB, G, N), bmap),
        compiler_params=pltpu.CompilerParams(
            dimension_semantics=("parallel",),
            vmem_limit_bytes=32 * 1024 * 1024),
    )(last_emb, emb, mask,
      prepped["wq_t"], prepped["wqg_t"], prepped["wk_t"], prepped["wv_t"],
      prepped["wm_t"], prepped["bias"])


# ----------------------------------------------------------------------------
# Pure-JAX reference (mirrors the PyTorch forward at step 0)
# ----------------------------------------------------------------------------
def reference_forward(last_node, group_ninf_mask, embeddings, params,
                      n_heads=8, tanh_clipping=10.0):
    Wqg, Wqf, Wql, Wk, Wv, Wm, bm = params
    B, N, H = embeddings.shape
    G = group_ninf_mask.shape[1]
    d = H // n_heads

    graph_emb = embeddings.mean(axis=1, keepdims=True)
    q_graph = graph_emb @ Wqg.T
    k_proj = embeddings @ Wk.T
    v_proj = embeddings @ Wv.T
    idx = jnp.broadcast_to(last_node[:, :, None], (B, G, H))
    last_emb = jnp.take_along_axis(embeddings, idx, axis=1)

    glimpse_q = last_emb @ Wqf.T + last_emb @ Wql.T + q_graph

    def make_heads(x):  # (B, L, H) -> (B, h, L, d)
        Bx, L, _ = x.shape
        return x.reshape(Bx, L, n_heads, d).transpose(0, 2, 1, 3)

    qh, kh, vh = make_heads(glimpse_q), make_heads(k_proj), make_heads(v_proj)
    score = jnp.einsum('bhgd,bhnd->bhgn', qh, kh) / math.sqrt(d)
    score = score + group_ninf_mask[:, None, :, :]
    attn = jax.nn.softmax(score, axis=-1)
    out = jnp.einsum('bhgn,bhnd->bhgd', attn, vh)
    attn_out = out.transpose(0, 2, 1, 3).reshape(B, G, H)

    final_q = attn_out @ Wm.T + bm
    logits = jnp.einsum('bgh,bnh->bgn', final_q, embeddings)
    logits = jnp.tanh(logits) * tanh_clipping + group_ninf_mask
    return jax.nn.softmax(logits, axis=-1)


# ----------------------------------------------------------------------------
if __name__ == "__main__":
    B, N, G = 2, 16, 8
    H, n_heads = 128, 8          # embedding_dim=128, key_dim=16
    tanh_clipping = 10.0

    key = jax.random.PRNGKey(0)
    ks = jax.random.split(key, 10)
    wscale = 1.0 / math.sqrt(H)
    Wqg = jax.random.normal(ks[0], (H, H), jnp.float32) * wscale
    Wqf = jax.random.normal(ks[1], (H, H), jnp.float32) * wscale
    Wql = jax.random.normal(ks[2], (H, H), jnp.float32) * wscale
    Wk  = jax.random.normal(ks[3], (H, H), jnp.float32) * wscale
    Wv  = jax.random.normal(ks[4], (H, H), jnp.float32) * wscale
    Wm  = jax.random.normal(ks[5], (H, H), jnp.float32) * wscale
    bm  = jax.random.normal(ks[6], (H,), jnp.float32) * 0.01
    params = (Wqg, Wqf, Wql, Wk, Wv, Wm, bm)

    embeddings = jax.random.normal(ks[7], (B, N, H), jnp.float32)
    last_node = jax.random.randint(ks[8], (B, G), 0, N, dtype=jnp.int32)

    # deterministic 0 / -inf mask; never fully masks a row
    g_idx = jnp.arange(G)[:, None]
    n_idx = jnp.arange(N)[None, :]
    base = jnp.where((g_idx + n_idx) % 5 == 0, -jnp.inf, 0.0).astype(jnp.float32)
    group_ninf_mask = jnp.broadcast_to(base, (B, G, N)).astype(jnp.float32)

    # one-time param prep (weight transposes hoisted out of the forward)
    prepped = prepare_decoder_params(params, compute_dtype=jnp.float32)

    fwd = jax.jit(functools.partial(decoder_forward,
                                    n_heads=n_heads,
                                    tanh_clipping=tanh_clipping,
                                    compute_dtype=jnp.float32))
    probs = fwd(last_node, group_ninf_mask, embeddings, prepped)
    probs = jax.block_until_ready(probs)

    ref = reference_forward(last_node, group_ninf_mask, embeddings, params,
                            n_heads=n_heads, tanh_clipping=tanh_clipping)

    assert not bool(jnp.any(jnp.isnan(probs))), "Probs should not contain any nans!"
    assert jnp.allclose(probs, ref, atol=1e-3, rtol=1e-2), "mismatch vs reference"
    assert jnp.allclose(jnp.sum(probs, axis=-1), 1.0, atol=1e-4)
    print("KERNEL_OK")
</pallas_src>

<mosaic_0001>
module attributes {stable_mosaic.version = 11 : i64} {
  func.func @decoder_kernel(%arg0: i32, %arg1: memref<2x8x128xf32, #tpu.memory_space<vmem>>, %arg2: memref<2x16x128xf32, #tpu.memory_space<vmem>>, %arg3: memref<2x8x16xf32, #tpu.memory_space<vmem>>, %arg4: memref<128x128xf32, #tpu.memory_space<vmem>>, %arg5: memref<128x128xf32, #tpu.memory_space<vmem>>, %arg6: memref<128x128xf32, #tpu.memory_space<vmem>>, %arg7: memref<128x128xf32, #tpu.memory_space<vmem>>, %arg8: memref<128x128xf32, #tpu.memory_space<vmem>>, %arg9: memref<1x128xf32, #tpu.memory_space<vmem>>, %arg10: memref<2x8x16xf32, #tpu.memory_space<vmem>>) attributes {dimension_semantics = [#tpu.dimension_semantics<parallel>], iteration_bounds = array<i64: 1>, scalar_prefetch = 0 : i64, scratch_operands = 0 : i64, tpu.core_type = #tpu.core_type<tc>, window_params = [{transform_indices = @transform_0, window_bounds = array<i64: 2, 8, 128>}, {transform_indices = @transform_1, window_bounds = array<i64: 2, 16, 128>}, {transform_indices = @transform_2, window_bounds = array<i64: 2, 8, 16>}, {pipeline_mode = #tpu.pipeline_mode<synchronous>, transform_indices = @transform_3, window_bounds = array<i64: 128, 128>}, {pipeline_mode = #tpu.pipeline_mode<synchronous>, transform_indices = @transform_4, window_bounds = array<i64: 128, 128>}, {pipeline_mode = #tpu.pipeline_mode<synchronous>, transform_indices = @transform_5, window_bounds = array<i64: 128, 128>}, {pipeline_mode = #tpu.pipeline_mode<synchronous>, transform_indices = @transform_6, window_bounds = array<i64: 128, 128>}, {pipeline_mode = #tpu.pipeline_mode<synchronous>, transform_indices = @transform_7, window_bounds = array<i64: 128, 128>}, {pipeline_mode = #tpu.pipeline_mode<synchronous>, transform_indices = @transform_8, window_bounds = array<i64: 1, 128>}, {transform_indices = @transform_9, window_bounds = array<i64: 2, 8, 16>}]} {
    %c0 = arith.constant 0 : index
    %c0_0 = arith.constant 0 : index
    %c0_1 = arith.constant 0 : index
    %0 = vector.load %arg2[%c0, %c0_0, %c0_1] : memref<2x16x128xf32, #tpu.memory_space<vmem>>, vector<2x16x128xf32>
    %c0_2 = arith.constant 0 : index
    %c0_3 = arith.constant 0 : index
    %c0_4 = arith.constant 0 : index
    %1 = vector.load %arg3[%c0_2, %c0_3, %c0_4] : memref<2x8x16xf32, #tpu.memory_space<vmem>>, vector<2x8x16xf32>
    %2 = vector.shape_cast %0 : vector<2x16x128xf32> to vector<32x128xf32>
    %c0_5 = arith.constant 0 : index
    %c0_6 = arith.constant 0 : index
    %c0_7 = arith.constant 0 : index
    %3 = vector.load %arg1[%c0_5, %c0_6, %c0_7] : memref<2x8x128xf32, #tpu.memory_space<vmem>>, vector<2x8x128xf32>
    %4 = vector.shape_cast %3 : vector<2x8x128xf32> to vector<16x128xf32>
    %cst = arith.constant dense<0.000000e+00> : vector<2x128xf32>
    %5 = vector.multi_reduction <add>, %0, %cst [1] : vector<2x16x128xf32> to vector<2x128xf32>
    %cst_8 = arith.constant 1.600000e+01 : f32
    %6 = vector.broadcast %cst_8 : f32 to vector<2x128xf32>
    %7 = arith.divf %5, %6 : vector<2x128xf32>
    %c0_9 = arith.constant 0 : index
    %c0_10 = arith.constant 0 : index
    %8 = vector.load %arg5[%c0_9, %c0_10] : memref<128x128xf32, #tpu.memory_space<vmem>>, vector<128x128xf32>
    %cst_11 = arith.constant dense<0.000000e+00> : vector<2x128xf32>
    %9 = tpu.matmul %7, %8, %cst_11 {dimension_numbers = #tpu.dot_dimension_numbers<[1], [0], [0], [1], [0, 0, 1, 1], [], []>} : vector<2x128xf32>, vector<128x128xf32>, vector<2x128xf32> -> vector<2x128xf32>
    %c0_12 = arith.constant 0 : index
    %c0_13 = arith.constant 0 : index
    %10 = vector.load %arg6[%c0_12, %c0_13] : memref<128x128xf32, #tpu.memory_space<vmem>>, vector<128x128xf32>
    %cst_14 = arith.constant dense<0.000000e+00> : vector<32x128xf32>
    %11 = tpu.matmul %2, %10, %cst_14 {dimension_numbers = #tpu.dot_dimension_numbers<[1], [0], [0], [1], [0, 0, 1, 1], [], []>} : vector<32x128xf32>, vector<128x128xf32>, vector<32x128xf32> -> vector<32x128xf32>
    %12 = vector.shape_cast %11 : vector<32x128xf32> to vector<2x16x128xf32>
    %c0_15 = arith.constant 0 : index
    %c0_16 = arith.constant 0 : index
    %13 = vector.load %arg7[%c0_15, %c0_16] : memref<128x128xf32, #tpu.memory_space<vmem>>, vector<128x128xf32>
    %cst_17 = arith.constant dense<0.000000e+00> : vector<32x128xf32>
    %14 = tpu.matmul %2, %13, %cst_17 {dimension_numbers = #tpu.dot_dimension_numbers<[1], [0], [0], [1], [0, 0, 1, 1], [], []>} : vector<32x128xf32>, vector<128x128xf32>, vector<32x128xf32> -> vector<32x128xf32>
    %15 = vector.shape_cast %14 : vector<32x128xf32> to vector<2x16x128xf32>
    %c0_18 = arith.constant 0 : index
    %c0_19 = arith.constant 0 : index
    %16 = vector.load %arg4[%c0_18, %c0_19] : memref<128x128xf32, #tpu.memory_space<vmem>>, vector<128x128xf32>
    %cst_20 = arith.constant dense<0.000000e+00> : vector<16x128xf32>
    %17 = tpu.matmul %4, %16, %cst_20 {dimension_numbers = #tpu.dot_dimension_numbers<[1], [0], [0], [1], [0, 0, 1, 1], [], []>} : vector<16x128xf32>, vector<128x128xf32>, vector<16x128xf32> -> vector<16x128xf32>
    %18 = vector.shape_cast %17 : vector<16x128xf32> to vector<2x8x128xf32>
    %19 = vector.shape_cast %9 : vector<2x128xf32> to vector<2x1x128xf32>
    %20 = vector.broadcast %19 : vector<2x1x128xf32> to vector<2x8x128xf32>
    %21 = arith.addf %18, %20 : vector<2x8x128xf32>
    %c0_21 = arith.constant 0 : index
    %c0_22 = arith.constant 0 : index
    %22 = vector.load %arg8[%c0_21, %c0_22] : memref<128x128xf32, #tpu.memory_space<vmem>>, vector<128x128xf32>
    %cst_23 = arith.constant 0.000000e+00 : f32
    %23 = vector.broadcast %cst_23 : f32 to vector<16x128xf32>
    %24 = vector.extract_strided_slice %21 {offsets = [0, 0, 0], sizes = [2, 8, 16], strides = [1, 1, 1]} : vector<2x8x128xf32> to vector<2x8x16xf32>
    %25 = vector.extract_strided_slice %12 {offsets = [0, 0, 0], sizes = [2, 16, 16], strides = [1, 1, 1]} : vector<2x16x128xf32> to vector<2x16x16xf32>
    %26 = vector.extract_strided_slice %15 {offsets = [0, 0, 0], sizes = [2, 16, 16], strides = [1, 1, 1]} : vector<2x16x128xf32> to vector<2x16x16xf32>
    "tpu.trace_start"() <{level = 10 : i32, message = "bgd,bnd->bgn"}> : () -> ()
    %cst_24 = arith.constant dense<0.000000e+00> : vector<2x8x16xf32>
    %27 = tpu.matmul %24, %25, %cst_24 {dimension_numbers = #tpu.dot_dimension_numbers<[2], [2], [1], [1], [0, 0, 0, 1, 1, 1], [0], [0]>} : vector<2x8x16xf32>, vector<2x16x16xf32>, vector<2x8x16xf32> -> vector<2x8x16xf32>
    "tpu.trace_stop"() : () -> ()
    %cst_25 = arith.constant 2.500000e-01 : f32
    %28 = vector.broadcast %cst_25 : f32 to vector<2x8x16xf32>
    %29 = arith.mulf %27, %28 : vector<2x8x16xf32>
    %30 = arith.addf %29, %1 : vector<2x8x16xf32>
    %cst_26 = arith.constant dense<0xFF800000> : vector<2x8xf32>
    %31 = vector.multi_reduction <maximumf>, %30, %cst_26 [2] : vector<2x8x16xf32> to vector<2x8xf32>
    %32 = vector.shape_cast %31 : vector<2x8xf32> to vector<2x8x1xf32>
    %33 = vector.broadcast %32 : vector<2x8x1xf32> to vector<2x8x16xf32>
    %34 = arith.subf %30, %33 : vector<2x8x16xf32>
    %35 = math.exp %34 : vector<2x8x16xf32>
    %cst_27 = arith.constant dense<0.000000e+00> : vector<2x8xf32>
    %36 = vector.multi_reduction <add>, %35, %cst_27 [2] : vector<2x8x16xf32> to vector<2x8xf32>
    %37 = vector.shape_cast %36 : vector<2x8xf32> to vector<2x8x1xf32>
    %38 = vector.broadcast %37 : vector<2x8x1xf32> to vector<2x8x16xf32>
    %39 = arith.divf %35, %38 : vector<2x8x16xf32>
    "tpu.trace_start"() <{level = 10 : i32, message = "bgn,bnd->bgd"}> : () -> ()
    %cst_28 = arith.constant dense<0.000000e+00> : vector<2x8x16xf32>
    %40 = tpu.matmul %39, %26, %cst_28 {dimension_numbers = #tpu.dot_dimension_numbers<[2], [1], [1], [2], [0, 0, 0, 1, 1, 2], [0], [0]>} : vector<2x8x16xf32>, vector<2x16x16xf32>, vector<2x8x16xf32> -> vector<2x8x16xf32>
    "tpu.trace_stop"() : () -> ()
    %41 = vector.shape_cast %40 : vector<2x8x16xf32> to vector<16x16xf32>
    %42 = vector.extract_strided_slice %22 {offsets = [0, 0], sizes = [16, 128], strides = [1, 1]} : vector<128x128xf32> to vector<16x128xf32>
    %cst_29 = arith.constant dense<0.000000e+00> : vector<16x128xf32>
    %43 = tpu.matmul %41, %42, %cst_29 {dimension_numbers = #tpu.dot_dimension_numbers<[1], [0], [0], [1], [0, 0, 1, 1], [], []>} : vector<16x16xf32>, vector<16x128xf32>, vector<16x128xf32> -> vector<16x128xf32>
    %44 = arith.addf %23, %43 : vector<16x128xf32>
    %45 = vector.extract_strided_slice %21 {offsets = [0, 0, 16], sizes = [2, 8, 16], strides = [1, 1, 1]} : vector<2x8x128xf32> to vector<2x8x16xf32>
    %46 = vector.extract_strided_slice %12 {offsets = [0, 0, 16], sizes = [2, 16, 16], strides = [1, 1, 1]} : vector<2x16x128xf32> to vector<2x16x16xf32>
    %47 = vector.extract_strided_slice %15 {offsets = [0, 0, 16], sizes = [2, 16, 16], strides = [1, 1, 1]} : vector<2x16x128xf32> to vector<2x16x16xf32>
    "tpu.trace_start"() <{level = 10 : i32, message = "bgd,bnd->bgn"}> : () -> ()
    %cst_30 = arith.constant dense<0.000000e+00> : vector<2x8x16xf32>
    %48 = tpu.matmul %45, %46, %cst_30 {dimension_numbers = #tpu.dot_dimension_numbers<[2], [2], [1], [1], [0, 0, 0, 1, 1, 1], [0], [0]>} : vector<2x8x16xf32>, vector<2x16x16xf32>, vector<2x8x16xf32> -> vector<2x8x16xf32>
    "tpu.trace_stop"() : () -> ()
    %cst_31 = arith.constant 2.500000e-01 : f32
    %49 = vector.broadcast %cst_31 : f32 to vector<2x8x16xf32>
    %50 = arith.mulf %48, %49 : vector<2x8x16xf32>
    %51 = arith.addf %50, %1 : vector<2x8x16xf32>
    %cst_32 = arith.constant dense<0xFF800000> : vector<2x8xf32>
    %52 = vector.multi_reduction <maximumf>, %51, %cst_32 [2] : vector<2x8x16xf32> to vector<2x8xf32>
    %53 = vector.shape_cast %52 : vector<2x8xf32> to vector<2x8x1xf32>
    %54 = vector.broadcast %53 : vector<2x8x1xf32> to vector<2x8x16xf32>
    %55 = arith.subf %51, %54 : vector<2x8x16xf32>
    %56 = math.exp %55 : vector<2x8x16xf32>
    %cst_33 = arith.constant dense<0.000000e+00> : vector<2x8xf32>
    %57 = vector.multi_reduction <add>, %56, %cst_33 [2] : vector<2x8x16xf32> to vector<2x8xf32>
    %58 = vector.shape_cast %57 : vector<2x8xf32> to vector<2x8x1xf32>
    %59 = vector.broadcast %58 : vector<2x8x1xf32> to vector<2x8x16xf32>
    %60 = arith.divf %56, %59 : vector<2x8x16xf32>
    "tpu.trace_start"() <{level = 10 : i32, message = "bgn,bnd->bgd"}> : () -> ()
    %cst_34 = arith.constant dense<0.000000e+00> : vector<2x8x16xf32>
    %61 = tpu.matmul %60, %47, %cst_34 {dimension_numbers = #tpu.dot_dimension_numbers<[2], [1], [1], [2], [0, 0, 0, 1, 1, 2], [0], [0]>} : vector<2x8x16xf32>, vector<2x16x16xf32>, vector<2x8x16xf32> -> vector<2x8x16xf32>
    "tpu.trace_stop"() : () -> ()
    %62 = vector.shape_cast %61 : vector<2x8x16xf32> to vector<16x16xf32>
    %63 = vector.extract_strided_slice %22 {offsets = [16, 0], sizes = [16, 128], strides = [1, 1]} : vector<128x128xf32> to vector<16x128xf32>
    %cst_35 = arith.constant dense<0.000000e+00> : vector<16x128xf32>
    %64 = tpu.matmul %62, %63, %cst_35 {dimension_numbers = #tpu.dot_dimension_numbers<[1], [0], [0], [1], [0, 0, 1, 1], [], []>} : vector<16x16xf32>, vector<16x128xf32>, vector<16x128xf32> -> vector<16x128xf32>
    %65 = arith.addf %44, %64 : vector<16x128xf32>
    %66 = vector.extract_strided_slice %21 {offsets = [0, 0, 32], sizes = [2, 8, 16], strides = [1, 1, 1]} : vector<2x8x128xf32> to vector<2x8x16xf32>
    %67 = vector.extract_strided_slice %12 {offsets = [0, 0, 32], sizes = [2, 16, 16], strides = [1, 1, 1]} : vector<2x16x128xf32> to vector<2x16x16xf32>
    %68 = vector.extract_strided_slice %15 {offsets = [0, 0, 32], sizes = [2, 16, 16], strides = [1, 1, 1]} : vector<2x16x128xf32> to vector<2x16x16xf32>
    "tpu.trace_start"() <{level = 10 : i32, message = "bgd,bnd->bgn"}> : () -> ()
    %cst_36 = arith.constant dense<0.000000e+00> : vector<2x8x16xf32>
    %69 = tpu.matmul %66, %67, %cst_36 {dimension_numbers = #tpu.dot_dimension_numbers<[2], [2], [1], [1], [0, 0, 0, 1, 1, 1], [0], [0]>} : vector<2x8x16xf32>, vector<2x16x16xf32>, vector<2x8x16xf32> -> vector<2x8x16xf32>
    "tpu.trace_stop"() : () -> ()
    %cst_37 = arith.constant 2.500000e-01 : f32
    %70 = vector.broadcast %cst_37 : f32 to vector<2x8x16xf32>
    %71 = arith.mulf %69, %70 : vector<2x8x16xf32>
    %72 = arith.addf %71, %1 : vector<2x8x16xf32>
    %cst_38 = arith.constant dense<0xFF800000> : vector<2x8xf32>
    %73 = vector.multi_reduction <maximumf>, %72, %cst_38 [2] : vector<2x8x16xf32> to vector<2x8xf32>
    %74 = vector.shape_cast %73 : vector<2x8xf32> to vector<2x8x1xf32>
    %75 = vector.broadcast %74 : vector<2x8x1xf32> to vector<2x8x16xf32>
    %76 = arith.subf %72, %75 : vector<2x8x16xf32>
    %77 = math.exp %76 : vector<2x8x16xf32>
    %cst_39 = arith.constant dense<0.000000e+00> : vector<2x8xf32>
    %78 = vector.multi_reduction <add>, %77, %cst_39 [2] : vector<2x8x16xf32> to vector<2x8xf32>
    %79 = vector.shape_cast %78 : vector<2x8xf32> to vector<2x8x1xf32>
    %80 = vector.broadcast %79 : vector<2x8x1xf32> to vector<2x8x16xf32>
    %81 = arith.divf %77, %80 : vector<2x8x16xf32>
    "tpu.trace_start"() <{level = 10 : i32, message = "bgn,bnd->bgd"}> : () -> ()
    %cst_40 = arith.constant dense<0.000000e+00> : vector<2x8x16xf32>
    %82 = tpu.matmul %81, %68, %cst_40 {dimension_numbers = #tpu.dot_dimension_numbers<[2], [1], [1], [2], [0, 0, 0, 1, 1, 2], [0], [0]>} : vector<2x8x16xf32>, vector<2x16x16xf32>, vector<2x8x16xf32> -> vector<2x8x16xf32>
    "tpu.trace_stop"() : () -> ()
    %83 = vector.shape_cast %82 : vector<2x8x16xf32> to vector<16x16xf32>
    %84 = vector.extract_strided_slice %22 {offsets = [32, 0], sizes = [16, 128], strides = [1, 1]} : vector<128x128xf32> to vector<16x128xf32>
    %cst_41 = arith.constant dense<0.000000e+00> : vector<16x128xf32>
    %85 = tpu.matmul %83, %84, %cst_41 {dimension_numbers = #tpu.dot_dimension_numbers<[1], [0], [0], [1], [0, 0, 1, 1], [], []>} : vector<16x16xf32>, vector<16x128xf32>, vector<16x128xf32> -> vector<16x128xf32>
    %86 = arith.addf %65, %85 : vector<16x128xf32>
    %87 = vector.extract_strided_slice %21 {offsets = [0, 0, 48], sizes = [2, 8, 16], strides = [1, 1, 1]} : vector<2x8x128xf32> to vector<2x8x16xf32>
    %88 = vector.extract_strided_slice %12 {offsets = [0, 0, 48], sizes = [2, 16, 16], strides = [1, 1, 1]} : vector<2x16x128xf32> to vector<2x16x16xf32>
    %89 = vector.extract_strided_slice %15 {offsets = [0, 0, 48], sizes = [2, 16, 16], strides = [1, 1, 1]} : vector<2x16x128xf32> to vector<2x16x16xf32>
    "tpu.trace_start"() <{level = 10 : i32, message = "bgd,bnd->bgn"}> : () -> ()
    %cst_42 = arith.constant dense<0.000000e+00> : vector<2x8x16xf32>
    %90 = tpu.matmul %87, %88, %cst_42 {dimension_numbers = #tpu.dot_dimension_numbers<[2], [2], [1], [1], [0, 0, 0, 1, 1, 1], [0], [0]>} : vector<2x8x16xf32>, vector<2x16x16xf32>, vector<2x8x16xf32> -> vector<2x8x16xf32>
    "tpu.trace_stop"() : () -> ()
    %cst_43 = arith.constant 2.500000e-01 : f32
    %91 = vector.broadcast %cst_43 : f32 to vector<2x8x16xf32>
    %92 = arith.mulf %90, %91 : vector<2x8x16xf32>
    %93 = arith.addf %92, %1 : vector<2x8x16xf32>
    %cst_44 = arith.constant dense<0xFF800000> : vector<2x8xf32>
    %94 = vector.multi_reduction <maximumf>, %93, %cst_44 [2] : vector<2x8x16xf32> to vector<2x8xf32>
    %95 = vector.shape_cast %94 : vector<2x8xf32> to vector<2x8x1xf32>
    %96 = vector.broadcast %95 : vector<2x8x1xf32> to vector<2x8x16xf32>
    %97 = arith.subf %93, %96 : vector<2x8x16xf32>
    %98 = math.exp %97 : vector<2x8x16xf32>
    %cst_45 = arith.constant dense<0.000000e+00> : vector<2x8xf32>
    %99 = vector.multi_reduction <add>, %98, %cst_45 [2] : vector<2x8x16xf32> to vector<2x8xf32>
    %100 = vector.shape_cast %99 : vector<2x8xf32> to vector<2x8x1xf32>
    %101 = vector.broadcast %100 : vector<2x8x1xf32> to vector<2x8x16xf32>
    %102 = arith.divf %98, %101 : vector<2x8x16xf32>
    "tpu.trace_start"() <{level = 10 : i32, message = "bgn,bnd->bgd"}> : () -> ()
    %cst_46 = arith.constant dense<0.000000e+00> : vector<2x8x16xf32>
    %103 = tpu.matmul %102, %89, %cst_46 {dimension_numbers = #tpu.dot_dimension_numbers<[2], [1], [1], [2], [0, 0, 0, 1, 1, 2], [0], [0]>} : vector<2x8x16xf32>, vector<2x16x16xf32>, vector<2x8x16xf32> -> vector<2x8x16xf32>
    "tpu.trace_stop"() : () -> ()
    %104 = vector.shape_cast %103 : vector<2x8x16xf32> to vector<16x16xf32>
    %105 = vector.extract_strided_slice %22 {offsets = [48, 0], sizes = [16, 128], strides = [1, 1]} : vector<128x128xf32> to vector<16x128xf32>
    %cst_47 = arith.constant dense<0.000000e+00> : vector<16x128xf32>
    %106 = tpu.matmul %104, %105, %cst_47 {dimension_numbers = #tpu.dot_dimension_numbers<[1], [0], [0], [1], [0, 0, 1, 1], [], []>} : vector<16x16xf32>, vector<16x128xf32>, vector<16x128xf32> -> vector<16x128xf32>
    %107 = arith.addf %86, %106 : vector<16x128xf32>
    %108 = vector.extract_strided_slice %21 {offsets = [0, 0, 64], sizes = [2, 8, 16], strides = [1, 1, 1]} : vector<2x8x128xf32> to vector<2x8x16xf32>
    %109 = vector.extract_strided_slice %12 {offsets = [0, 0, 64], sizes = [2, 16, 16], strides = [1, 1, 1]} : vector<2x16x128xf32> to vector<2x16x16xf32>
    %110 = vector.extract_strided_slice %15 {offsets = [0, 0, 64], sizes = [2, 16, 16], strides = [1, 1, 1]} : vector<2x16x128xf32> to vector<2x16x16xf32>
    "tpu.trace_start"() <{level = 10 : i32, message = "bgd,bnd->bgn"}> : () -> ()
    %cst_48 = arith.constant dense<0.000000e+00> : vector<2x8x16xf32>
    %111 = tpu.matmul %108, %109, %cst_48 {dimension_numbers = #tpu.dot_dimension_numbers<[2], [2], [1], [1], [0, 0, 0, 1, 1, 1], [0], [0]>} : vector<2x8x16xf32>, vector<2x16x16xf32>, vector<2x8x16xf32> -> vector<2x8x16xf32>
    "tpu.trace_stop"() : () -> ()
    %cst_49 = arith.constant 2.500000e-01 : f32
    %112 = vector.broadcast %cst_49 : f32 to vector<2x8x16xf32>
    %113 = arith.mulf %111, %112 : vector<2x8x16xf32>
    %114 = arith.addf %113, %1 : vector<2x8x16xf32>
    %cst_50 = arith.constant dense<0xFF800000> : vector<2x8xf32>
    %115 = vector.multi_reduction <maximumf>, %114, %cst_50 [2] : vector<2x8x16xf32> to vector<2x8xf32>
    %116 = vector.shape_cast %115 : vector<2x8xf32> to vector<2x8x1xf32>
    %117 = vector.broadcast %116 : vector<2x8x1xf32> to vector<2x8x16xf32>
    %118 = arith.subf %114, %117 : vector<2x8x16xf32>
    %119 = math.exp %118 : vector<2x8x16xf32>
    %cst_51 = arith.constant dense<0.000000e+00> : vector<2x8xf32>
    %120 = vector.multi_reduction <add>, %119, %cst_51 [2] : vector<2x8x16xf32> to vector<2x8xf32>
    %121 = vector.shape_cast %120 : vector<2x8xf32> to vector<2x8x1xf32>
    %122 = vector.broadcast %121 : vector<2x8x1xf32> to vector<2x8x16xf32>
    %123 = arith.divf %119, %122 : vector<2x8x16xf32>
    "tpu.trace_start"() <{level = 10 : i32, message = "bgn,bnd->bgd"}> : () -> ()
    %cst_52 = arith.constant dense<0.000000e+00> : vector<2x8x16xf32>
    %124 = tpu.matmul %123, %110, %cst_52 {dimension_numbers = #tpu.dot_dimension_numbers<[2], [1], [1], [2], [0, 0, 0, 1, 1, 2], [0], [0]>} : vector<2x8x16xf32>, vector<2x16x16xf32>, vector<2x8x16xf32> -> vector<2x8x16xf32>
    "tpu.trace_stop"() : () -> ()
    %125 = vector.shape_cast %124 : vector<2x8x16xf32> to vector<16x16xf32>
    %126 = vector.extract_strided_slice %22 {offsets = [64, 0], sizes = [16, 128], strides = [1, 1]} : vector<128x128xf32> to vector<16x128xf32>
    %cst_53 = arith.constant dense<0.000000e+00> : vector<16x128xf32>
    %127 = tpu.matmul %125, %126, %cst_53 {dimension_numbers = #tpu.dot_dimension_numbers<[1], [0], [0], [1], [0, 0, 1, 1], [], []>} : vector<16x16xf32>, vector<16x128xf32>, vector<16x128xf32> -> vector<16x128xf32>
    %128 = arith.addf %107, %127 : vector<16x128xf32>
    %129 = vector.extract_strided_slice %21 {offsets = [0, 0, 80], sizes = [2, 8, 16], strides = [1, 1, 1]} : vector<2x8x128xf32> to vector<2x8x16xf32>
    %130 = vector.extract_strided_slice %12 {offsets = [0, 0, 80], sizes = [2, 16, 16], strides = [1, 1, 1]} : vector<2x16x128xf32> to vector<2x16x16xf32>
    %131 = vector.extract_strided_slice %15 {offsets = [0, 0, 80], sizes = [2, 16, 16], strides = [1, 1, 1]} : vector<2x16x128xf32> to vector<2x16x16xf32>
    "tpu.trace_start"() <{level = 10 : i32, message = "bgd,bnd->bgn"}> : () -> ()
    %cst_54 = arith.constant dense<0.000000e+00> : vector<2x8x16xf32>
    %132 = tpu.matmul %129, %130, %cst_54 {dimension_numbers = #tpu.dot_dimension_numbers<[2], [2], [1], [1], [0, 0, 0, 1, 1, 1], [0], [0]>} : vector<2x8x16xf32>, vector<2x16x16xf32>, vector<2x8x16xf32> -> vector<2x8x16xf32>
    "tpu.trace_stop"() : () -> ()
    %cst_55 = arith.constant 2.500000e-01 : f32
    %133 = vector.broadcast %cst_55 : f32 to vector<2x8x16xf32>
    %134 = arith.mulf %132, %133 : vector<2x8x16xf32>
    %135 = arith.addf %134, %1 : vector<2x8x16xf32>
    %cst_56 = arith.constant dense<0xFF800000> : vector<2x8xf32>
    %136 = vector.multi_reduction <maximumf>, %135, %cst_56 [2] : vector<2x8x16xf32> to vector<2x8xf32>
    %137 = vector.shape_cast %136 : vector<2x8xf32> to vector<2x8x1xf32>
    %138 = vector.broadcast %137 : vector<2x8x1xf32> to vector<2x8x16xf32>
    %139 = arith.subf %135, %138 : vector<2x8x16xf32>
    %140 = math.exp %139 : vector<2x8x16xf32>
    %cst_57 = arith.constant dense<0.000000e+00> : vector<2x8xf32>
    %141 = vector.multi_reduction <add>, %140, %cst_57 [2] : vector<2x8x16xf32> to vector<2x8xf32>
    %142 = vector.shape_cast %141 : vector<2x8xf32> to vector<2x8x1xf32>
    %143 = vector.broadcast %142 : vector<2x8x1xf32> to vector<2x8x16xf32>
    %144 = arith.divf %140, %143 : vector<2x8x16xf32>
    "tpu.trace_start"() <{level = 10 : i32, message = "bgn,bnd->bgd"}> : () -> ()
    %cst_58 = arith.constant dense<0.000000e+00> : vector<2x8x16xf32>
    %145 = tpu.matmul %144, %131, %cst_58 {dimension_numbers = #tpu.dot_dimension_numbers<[2], [1], [1], [2], [0, 0, 0, 1, 1, 2], [0], [0]>} : vector<2x8x16xf32>, vector<2x16x16xf32>, vector<2x8x16xf32> -> vector<2x8x16xf32>
    "tpu.trace_stop"() : () -> ()
    %146 = vector.shape_cast %145 : vector<2x8x16xf32> to vector<16x16xf32>
    %147 = vector.extract_strided_slice %22 {offsets = [80, 0], sizes = [16, 128], strides = [1, 1]} : vector<128x128xf32> to vector<16x128xf32>
    %cst_59 = arith.constant dense<0.000000e+00> : vector<16x128xf32>
    %148 = tpu.matmul %146, %147, %cst_59 {dimension_numbers = #tpu.dot_dimension_numbers<[1], [0], [0], [1], [0, 0, 1, 1], [], []>} : vector<16x16xf32>, vector<16x128xf32>, vector<16x128xf32> -> vector<16x128xf32>
    %149 = arith.addf %128, %148 : vector<16x128xf32>
    %150 = vector.extract_strided_slice %21 {offsets = [0, 0, 96], sizes = [2, 8, 16], strides = [1, 1, 1]} : vector<2x8x128xf32> to vector<2x8x16xf32>
    %151 = vector.extract_strided_slice %12 {offsets = [0, 0, 96], sizes = [2, 16, 16], strides = [1, 1, 1]} : vector<2x16x128xf32> to vector<2x16x16xf32>
    %152 = vector.extract_strided_slice %15 {offsets = [0, 0, 96], sizes = [2, 16, 16], strides = [1, 1, 1]} : vector<2x16x128xf32> to vector<2x16x16xf32>
    "tpu.trace_start"() <{level = 10 : i32, message = "bgd,bnd->bgn"}> : () -> ()
    %cst_60 = arith.constant dense<0.000000e+00> : vector<2x8x16xf32>
    %153 = tpu.matmul %150, %151, %cst_60 {dimension_numbers = #tpu.dot_dimension_numbers<[2], [2], [1], [1], [0, 0, 0, 1, 1, 1], [0], [0]>} : vector<2x8x16xf32>, vector<2x16x16xf32>, vector<2x8x16xf32> -> vector<2x8x16xf32>
    "tpu.trace_stop"() : () -> ()
    %cst_61 = arith.constant 2.500000e-01 : f32
    %154 = vector.broadcast %cst_61 : f32 to vector<2x8x16xf32>
    %155 = arith.mulf %153, %154 : vector<2x8x16xf32>
    %156 = arith.addf %155, %1 : vector<2x8x16xf32>
    %cst_62 = arith.constant dense<0xFF800000> : vector<2x8xf32>
    %157 = vector.multi_reduction <maximumf>, %156, %cst_62 [2] : vector<2x8x16xf32> to vector<2x8xf32>
    %158 = vector.shape_cast %157 : vector<2x8xf32> to vector<2x8x1xf32>
    %159 = vector.broadcast %158 : vector<2x8x1xf32> to vector<2x8x16xf32>
    %160 = arith.subf %156, %159 : vector<2x8x16xf32>
    %161 = math.exp %160 : vector<2x8x16xf32>
    %cst_63 = arith.constant dense<0.000000e+00> : vector<2x8xf32>
    %162 = vector.multi_reduction <add>, %161, %cst_63 [2] : vector<2x8x16xf32> to vector<2x8xf32>
    %163 = vector.shape_cast %162 : vector<2x8xf32> to vector<2x8x1xf32>
    %164 = vector.broadcast %163 : vector<2x8x1xf32> to vector<2x8x16xf32>
    %165 = arith.divf %161, %164 : vector<2x8x16xf32>
    "tpu.trace_start"() <{level = 10 : i32, message = "bgn,bnd->bgd"}> : () -> ()
    %cst_64 = arith.constant dense<0.000000e+00> : vector<2x8x16xf32>
    %166 = tpu.matmul %165, %152, %cst_64 {dimension_numbers = #tpu.dot_dimension_numbers<[2], [1], [1], [2], [0, 0, 0, 1, 1, 2], [0], [0]>} : vector<2x8x16xf32>, vector<2x16x16xf32>, vector<2x8x16xf32> -> vector<2x8x16xf32>
    "tpu.trace_stop"() : () -> ()
    %167 = vector.shape_cast %166 : vector<2x8x16xf32> to vector<16x16xf32>
    %168 = vector.extract_strided_slice %22 {offsets = [96, 0], sizes = [16, 128], strides = [1, 1]} : vector<128x128xf32> to vector<16x128xf32>
    %cst_65 = arith.constant dense<0.000000e+00> : vector<16x128xf32>
    %169 = tpu.matmul %167, %168, %cst_65 {dimension_numbers = #tpu.dot_dimension_numbers<[1], [0], [0], [1], [0, 0, 1, 1], [], []>} : vector<16x16xf32>, vector<16x128xf32>, vector<16x128xf32> -> vector<16x128xf32>
    %170 = arith.addf %149, %169 : vector<16x128xf32>
    %171 = vector.extract_strided_slice %21 {offsets = [0, 0, 112], sizes = [2, 8, 16], strides = [1, 1, 1]} : vector<2x8x128xf32> to vector<2x8x16xf32>
    %172 = vector.extract_strided_slice %12 {offsets = [0, 0, 112], sizes = [2, 16, 16], strides = [1, 1, 1]} : vector<2x16x128xf32> to vector<2x16x16xf32>
    %173 = vector.extract_strided_slice %15 {offsets = [0, 0, 112], sizes = [2, 16, 16], strides = [1, 1, 1]} : vector<2x16x128xf32> to vector<2x16x16xf32>
    "tpu.trace_start"() <{level = 10 : i32, message = "bgd,bnd->bgn"}> : () -> ()
    %cst_66 = arith.constant dense<0.000000e+00> : vector<2x8x16xf32>
    %174 = tpu.matmul %171, %172, %cst_66 {dimension_numbers = #tpu.dot_dimension_numbers<[2], [2], [1], [1], [0, 0, 0, 1, 1, 1], [0], [0]>} : vector<2x8x16xf32>, vector<2x16x16xf32>, vector<2x8x16xf32> -> vector<2x8x16xf32>
    "tpu.trace_stop"() : () -> ()
    %cst_67 = arith.constant 2.500000e-01 : f32
    %175 = vector.broadcast %cst_67 : f32 to vector<2x8x16xf32>
    %176 = arith.mulf %174, %175 : vector<2x8x16xf32>
    %177 = arith.addf %176, %1 : vector<2x8x16xf32>
    %cst_68 = arith.constant dense<0xFF800000> : vector<2x8xf32>
    %178 = vector.multi_reduction <maximumf>, %177, %cst_68 [2] : vector<2x8x16xf32> to vector<2x8xf32>
    %179 = vector.shape_cast %178 : vector<2x8xf32> to vector<2x8x1xf32>
    %180 = vector.broadcast %179 : vector<2x8x1xf32> to vector<2x8x16xf32>
    %181 = arith.subf %177, %180 : vector<2x8x16xf32>
    %182 = math.exp %181 : vector<2x8x16xf32>
    %cst_69 = arith.constant dense<0.000000e+00> : vector<2x8xf32>
    %183 = vector.multi_reduction <add>, %182, %cst_69 [2] : vector<2x8x16xf32> to vector<2x8xf32>
    %184 = vector.shape_cast %183 : vector<2x8xf32> to vector<2x8x1xf32>
    %185 = vector.broadcast %184 : vector<2x8x1xf32> to vector<2x8x16xf32>
    %186 = arith.divf %182, %185 : vector<2x8x16xf32>
    "tpu.trace_start"() <{level = 10 : i32, message = "bgn,bnd->bgd"}> : () -> ()
    %cst_70 = arith.constant dense<0.000000e+00> : vector<2x8x16xf32>
    %187 = tpu.matmul %186, %173, %cst_70 {dimension_numbers = #tpu.dot_dimension_numbers<[2], [1], [1], [2], [0, 0, 0, 1, 1, 2], [0], [0]>} : vector<2x8x16xf32>, vector<2x16x16xf32>, vector<2x8x16xf32> -> vector<2x8x16xf32>
    "tpu.trace_stop"() : () -> ()
    %188 = vector.shape_cast %187 : vector<2x8x16xf32> to vector<16x16xf32>
    %189 = vector.extract_strided_slice %22 {offsets = [112, 0], sizes = [16, 128], strides = [1, 1]} : vector<128x128xf32> to vector<16x128xf32>
    %cst_71 = arith.constant dense<0.000000e+00> : vector<16x128xf32>
    %190 = tpu.matmul %188, %189, %cst_71 {dimension_numbers = #tpu.dot_dimension_numbers<[1], [0], [0], [1], [0, 0, 1, 1], [], []>} : vector<16x16xf32>, vector<16x128xf32>, vector<16x128xf32> -> vector<16x128xf32>
    %191 = arith.addf %170, %190 : vector<16x128xf32>
    %c0_72 = arith.constant 0 : index
    %c0_73 = arith.constant 0 : index
    %192 = vector.load %arg9[%c0_72, %c0_73] : memref<1x128xf32, #tpu.memory_space<vmem>>, vector<1x128xf32>
    %193 = vector.broadcast %192 : vector<1x128xf32> to vector<16x128xf32>
    %194 = arith.addf %191, %193 : vector<16x128xf32>
    %195 = vector.shape_cast %194 : vector<16x128xf32> to vector<2x8x128xf32>
    "tpu.trace_start"() <{level = 10 : i32, message = "bgh,bnh->bgn"}> : () -> ()
    %cst_74 = arith.constant dense<0.000000e+00> : vector<2x8x16xf32>
    %196 = tpu.matmul %195, %0, %cst_74 {dimension_numbers = #tpu.dot_dimension_numbers<[2], [2], [1], [1], [0, 0, 0, 1, 1, 1], [0], [0]>} : vector<2x8x128xf32>, vector<2x16x128xf32>, vector<2x8x16xf32> -> vector<2x8x16xf32>
    "tpu.trace_stop"() : () -> ()
    %197 = math.tanh %196 : vector<2x8x16xf32>
    %cst_75 = arith.constant 1.000000e+01 : f32
    %198 = vector.broadcast %cst_75 : f32 to vector<2x8x16xf32>
    %199 = arith.mulf %197, %198 : vector<2x8x16xf32>
    %200 = arith.addf %199, %1 : vector<2x8x16xf32>
    %cst_76 = arith.constant dense<0xFF800000> : vector<2x8xf32>
    %201 = vector.multi_reduction <maximumf>, %200, %cst_76 [2] : vector<2x8x16xf32> to vector<2x8xf32>
    %202 = vector.shape_cast %201 : vector<2x8xf32> to vector<2x8x1xf32>
    %203 = vector.broadcast %202 : vector<2x8x1xf32> to vector<2x8x16xf32>
    %204 = arith.subf %200, %203 : vector<2x8x16xf32>
    %205 = math.exp %204 : vector<2x8x16xf32>
    %cst_77 = arith.constant dense<0.000000e+00> : vector<2x8xf32>
    %206 = vector.multi_reduction <add>, %205, %cst_77 [2] : vector<2x8x16xf32> to vector<2x8xf32>
    %207 = vector.shape_cast %206 : vector<2x8xf32> to vector<2x8x1xf32>
    %208 = vector.broadcast %207 : vector<2x8x1xf32> to vector<2x8x16xf32>
    %209 = arith.divf %205, %208 : vector<2x8x16xf32>
    %c0_78 = arith.constant 0 : index
    %c0_79 = arith.constant 0 : index
    %c0_80 = arith.constant 0 : index
    %210 = vector.load %arg10[%c0_78, %c0_79, %c0_80] : memref<2x8x16xf32, #tpu.memory_space<vmem>>, vector<2x8x16xf32>
    tpu.vector_store %arg10[%c0_78, %c0_79, %c0_80], %209 {strides = array<i32>} : memref<2x8x16xf32, #tpu.memory_space<vmem>>, vector<2x8x16xf32>,
    return
  }
  func.func @transform_0(%arg0: i32) -> (i32, i32, i32) {
    %c0_i32 = arith.constant 0 : i32
    %c0_i32_0 = arith.constant 0 : i32
    %c0_i32_1 = arith.constant 0 : i32
    return %arg0, %c0_i32, %c0_i32_0 : i32, i32, i32
  }
  func.func @transform_1(%arg0: i32) -> (i32, i32, i32) {
    %c0_i32 = arith.constant 0 : i32
    %c0_i32_0 = arith.constant 0 : i32
    %c0_i32_1 = arith.constant 0 : i32
    return %arg0, %c0_i32, %c0_i32_0 : i32, i32, i32
  }
  func.func @transform_2(%arg0: i32) -> (i32, i32, i32) {
    %c0_i32 = arith.constant 0 : i32
    %c0_i32_0 = arith.constant 0 : i32
    %c0_i32_1 = arith.constant 0 : i32
    return %arg0, %c0_i32, %c0_i32_0 : i32, i32, i32
  }
  func.func @transform_3(%arg0: i32) -> (i32, i32) {
    %c0_i32 = arith.constant 0 : i32
    %c0_i32_0 = arith.constant 0 : i32
    %c0_i32_1 = arith.constant 0 : i32
    return %c0_i32, %c0_i32_0 : i32, i32
  }
  func.func @transform_4(%arg0: i32) -> (i32, i32) {
    %c0_i32 = arith.constant 0 : i32
    %c0_i32_0 = arith.constant 0 : i32
    %c0_i32_1 = arith.constant 0 : i32
    return %c0_i32, %c0_i32_0 : i32, i32
  }
  func.func @transform_5(%arg0: i32) -> (i32, i32) {
    %c0_i32 = arith.constant 0 : i32
    %c0_i32_0 = arith.constant 0 : i32
    %c0_i32_1 = arith.constant 0 : i32
    return %c0_i32, %c0_i32_0 : i32, i32
  }
  func.func @transform_6(%arg0: i32) -> (i32, i32) {
    %c0_i32 = arith.constant 0 : i32
    %c0_i32_0 = arith.constant 0 : i32
    %c0_i32_1 = arith.constant 0 : i32
    return %c0_i32, %c0_i32_0 : i32, i32
  }
  func.func @transform_7(%arg0: i32) -> (i32, i32) {
    %c0_i32 = arith.constant 0 : i32
    %c0_i32_0 = arith.constant 0 : i32
    %c0_i32_1 = arith.constant 0 : i32
    return %c0_i32, %c0_i32_0 : i32, i32
  }
  func.func @transform_8(%arg0: i32) -> (i32, i32) {
    %c0_i32 = arith.constant 0 : i32
    %c0_i32_0 = arith.constant 0 : i32
    %c0_i32_1 = arith.constant 0 : i32
    return %c0_i32, %c0_i32_0 : i32, i32
  }
  func.func @transform_9(%arg0: i32) -> (i32, i32, i32) {
    %c0_i32 = arith.constant 0 : i32
    %c0_i32_0 = arith.constant 0 : i32
    %c0_i32_1 = arith.constant 0 : i32
    return %arg0, %c0_i32, %c0_i32_0 : i32, i32, i32
  }
}

</mosaic_0001>

<llo_original>
// kernel: decoder_forward.1
$region0: #{decoder_forward.1}
  #allocation0 [shape = 'u32[]', space=smem, size = 0x4, offset = 0x4, fixed_abs, tag = 'smem constant byte address 0x4 - core index']
  #allocation1 [shape = 'u32[72,128]{1,0:T(1,128)}', space=vmem, size = 0x9000, scoped, tag = 'internal scratch']
  %s0 = inlined_call_operand.vmem [shape: f32[2,8,128], index: 0, kind: input, shape index: {}]
  %s1 = inlined_call_operand.vmem [shape: f32[2,16,128], index: 1, kind: input, shape index: {}]
  %s2 = inlined_call_operand.vmem [shape: f32[2,8,16], index: 2, kind: input, shape index: {}]
  %s3 = inlined_call_operand.vmem [shape: f32[128,128], index: 3, kind: input, shape index: {}]
  %s4 = inlined_call_operand.vmem [shape: f32[128,128], index: 4, kind: input, shape index: {}]
  %s5 = inlined_call_operand.vmem [shape: f32[128,128], index: 5, kind: input, shape index: {}]
  %s6 = inlined_call_operand.vmem [shape: f32[128,128], index: 6, kind: input, shape index: {}]
  %s7 = inlined_call_operand.vmem [shape: f32[128,128], index: 7, kind: input, shape index: {}]
  %s8 = inlined_call_operand.vmem [shape: f32[1,128], index: 8, kind: input, shape index: {}]
  %s9 = inlined_call_operand.hbm [shape: f32[2,8,16], index: 9, kind: output, shape index: {}]
  %s10 = sld [smem:[#allocation0]]
  $region46: #{decoder_forward.1} parent=0
    _
  %s12 = ssub.s32 1, %s10
  %s13 = scalar_select 0, %s12, %s10
  $region1: #{decoder_forward.1} parent=0
    #allocation2 [shape = 'u8[8192]{0}', space=vmem, size = 0x2000, scoped, tag = 'output window, operand 0, single buffered']
    #allocation3 [shape = 's32[1]{0}', space=sflag, size = 0x4, scoped, tag = 'scoped memory for decoder_forward.1']
    %14 = vsyncpa [#allocation3], 0
    // Predicated region
    $region2: #{decoder_forward.1} parent=1 // pred_check
      _
    $region3: #{decoder_forward.1} parent=1 // pred_check_branch
      %16 = sbr.rel (0) target = $region5
    $region4: #{decoder_forward.1} parent=1 // pred_region
      _
    $region5: #{decoder_forward.1} parent=1 // pred_fallthru
      _
    // Predicated region
    $region6: #{decoder_forward.1} parent=1 // pred_check
      _
    $region7: #{decoder_forward.1} parent=1 // pred_check_branch
      %18 = sbr.rel (0) target = $region9
    $region8: #{decoder_forward.1} parent=1 // pred_region
      _
    $region9: #{decoder_forward.1} parent=1 // pred_fallthru
      _
    // Predicated region
    $region10: #{decoder_forward.1} parent=1 // pred_check
      _
    $region11: #{decoder_forward.1} parent=1 // pred_check_branch
      %20 = sbr.rel (0) target = $region13
    $region12: #{decoder_forward.1} parent=1 // pred_region
      _
    $region13: #{decoder_forward.1} parent=1 // pred_fallthru
      _
    // Predicated region
    $region14: #{decoder_forward.1} parent=1 // pred_check
      _
    $region15: #{decoder_forward.1} parent=1 // pred_check_branch
      %22 = sbr.rel (0) target = $region17
    $region16: #{decoder_forward.1} parent=1 // pred_region
      _
    $region17: #{decoder_forward.1} parent=1 // pred_fallthru
      _
    // Predicated region
    $region18: #{decoder_forward.1} parent=1 // pred_check
      _
    $region19: #{decoder_forward.1} parent=1 // pred_check_branch
      %24 = sbr.rel (0) target = $region21
    $region20: #{decoder_forward.1} parent=1 // pred_region
      _
    $region21: #{decoder_forward.1} parent=1 // pred_fallthru
      _
    // Predicated region
    $region22: #{decoder_forward.1} parent=1 // pred_check
      _
    $region23: #{decoder_forward.1} parent=1 // pred_check_branch
      %26 = sbr.rel (0) target = $region25
    $region24: #{decoder_forward.1} parent=1 // pred_region
      _
    $region25: #{decoder_forward.1} parent=1 // pred_fallthru
      _
    // Predicated region
    $region26: #{decoder_forward.1} parent=1 // pred_check
      _
    $region27: #{decoder_forward.1} parent=1 // pred_check_branch
      %28 = sbr.rel (0) target = $region29
    $region28: #{decoder_forward.1} parent=1 // pred_region
      _
    $region29: #{decoder_forward.1} parent=1 // pred_fallthru
      _
    // Predicated region
    $region30: #{decoder_forward.1} parent=1 // pred_check
      _
    $region31: #{decoder_forward.1} parent=1 // pred_check_branch
      %30 = sbr.rel (0) target = $region33
    $region32: #{decoder_forward.1} parent=1 // pred_region
      _
    $region33: #{decoder_forward.1} parent=1 // pred_fallthru
      _
    // Predicated region
    $region34: #{decoder_forward.1} parent=1 // pred_check
      _
    $region35: #{decoder_forward.1} parent=1 // pred_check_branch
      %32 = sbr.rel (0) target = $region37
    $region36: #{decoder_forward.1} parent=1 // pred_region
      _
    $region37: #{decoder_forward.1} parent=1 // pred_fallthru
      _
    %v33 = vld [vmem:[%s1] sm:$0xff]
    %v34 = vld [vmem:[%s1 + $0x8] sm:$0xff]
    %v35 = vld [vmem:[%s1 + $0x10] sm:$0xff]
    %v36 = vld [vmem:[%s1 + $0x18] sm:$0xff]
    %v37 = vld [vmem:[%s2] sm:$0xff]
    %v38 = vld [vmem:[%s2 + $0x8] sm:$0xff]
    %v39 = vld [vmem:[%s0] sm:$0xff]
    %v40 = vld [vmem:[%s0 + $0x8] sm:$0xff]
    %v41 = vadd.f32 %v33, %v34
    %v42 = vrot.slane %v41, 4
    %v43 = vadd.f32 %v41, %v42
    %v44 = vrot.slane %v43, 2
    %v45 = vadd.f32 %v43, %v44
    %v46 = vrot.slane %v45, 1
    %v47 = vadd.f32 %v45, %v46
    %v48 = vadd.f32 %v35, %v36
    %v49 = vrot.slane %v48, 4
    %v50 = vadd.f32 %v48, %v49
    %v51 = vrot.slane %v50, 2
    %v52 = vadd.f32 %v50, %v51
    %v53 = vrot.slane %v52, 1
    %v54 = vadd.f32 %v52, %v53
    %v55 = vrcp.pop 16.0
    %v56 = vmul.f32 16.0, %v55
    %v57 = vsub.f32 1.0, %v56
    %v58 = vmul.f32 %v55, %v57
    %v59 = vadd.f32 %v55, %v58
    %vm60 = vweird.f32 %v55
    %v61 = vsel %vm60, %v55, %v59
    %v62 = vmul.f32 %v47, %v61
    %v63 = vmul.f32 %v54, %v61
    %v64 = vld [vmem:[%s4] sm:$0xff]
    %v65 = vld [vmem:[%s4 + $0x8] sm:$0xff]
    %v66 = vld [vmem:[%s4 + $0x10] sm:$0xff]
    %v67 = vld [vmem:[%s4 + $0x18] sm:$0xff]
    %v68 = vld [vmem:[%s4 + $0x20] sm:$0xff]
    %v69 = vld [vmem:[%s4 + $0x28] sm:$0xff]
    %v70 = vld [vmem:[%s4 + $0x30] sm:$0xff]
    %v71 = vld [vmem:[%s4 + $0x38] sm:$0xff]
    %v72 = vld [vmem:[%s4 + $0x40] sm:$0xff]
    %v73 = vld [vmem:[%s4 + $0x48] sm:$0xff]
    %v74 = vld [vmem:[%s4 + $0x50] sm:$0xff]
    %v75 = vld [vmem:[%s4 + $0x58] sm:$0xff]
    %v76 = vld [vmem:[%s4 + $0x60] sm:$0xff]
    %v77 = vld [vmem:[%s4 + $0x68] sm:$0xff]
    %v78 = vld [vmem:[%s4 + $0x70] sm:$0xff]
    %v79 = vld [vmem:[%s4 + $0x78] sm:$0xff]
    %vm82 = vcmask 1041409
    %v83 = vsel %vm82, %v63, %v62
    %85 = vmatpush.msra.mxu0 %v79
    %86 = vmatpush.msra.mxu0 %v78
    %87 = vmatpush.msra.mxu0 %v77
    %88 = vmatpush.msra.mxu0 %v76
    %89 = vmatpush.msra.mxu0 %v75
    %90 = vmatpush.msra.mxu0 %v74
    %91 = vmatpush.msra.mxu0 %v73
    %92 = vmatpush.msra.mxu0 %v72
    %93 = vmatpush.msra.mxu0 %v71
    %94 = vmatpush.msra.mxu0 %v70
    %95 = vmatpush.msra.mxu0 %v69
    %96 = vmatpush.msra.mxu0 %v68
    %97 = vmatpush.msra.mxu0 %v67
    %98 = vmatpush.msra.mxu0 %v66
    %99 = vmatpush.msra.mxu0 %v65
    %100 = vmatpush.msra.mxu0 %v64
    %101 = vmatmul.f32.gmra.mxu0 %v83
    %v102 = vpop.f32.mrf.mxu0
    %v103 = vadd.f32 0.0, %v102
    %104 = vdwg.mxu0
    %v105 = vld [vmem:[%s5] sm:$0xff]
    %v106 = vld [vmem:[%s5 + $0x8] sm:$0xff]
    %v107 = vld [vmem:[%s5 + $0x10] sm:$0xff]
    %v108 = vld [vmem:[%s5 + $0x18] sm:$0xff]
    %v109 = vld [vmem:[%s5 + $0x20] sm:$0xff]
    %v110 = vld [vmem:[%s5 + $0x28] sm:$0xff]
    %v111 = vld [vmem:[%s5 + $0x30] sm:$0xff]
    %v112 = vld [vmem:[%s5 + $0x38] sm:$0xff]
    %v113 = vld [vmem:[%s5 + $0x40] sm:$0xff]
    %v114 = vld [vmem:[%s5 + $0x48] sm:$0xff]
    %v115 = vld [vmem:[%s5 + $0x50] sm:$0xff]
    %v116 = vld [vmem:[%s5 + $0x58] sm:$0xff]
    %v117 = vld [vmem:[%s5 + $0x60] sm:$0xff]
    %v118 = vld [vmem:[%s5 + $0x68] sm:$0xff]
    %v119 = vld [vmem:[%s5 + $0x70] sm:$0xff]
    %v120 = vld [vmem:[%s5 + $0x78] sm:$0xff]
    %121 = vmatpush.msra.mxu0 %v120
    %122 = vmatpush.msra.mxu0 %v119
    %123 = vmatpush.msra.mxu0 %v118
    %124 = vmatpush.msra.mxu0 %v117
    %125 = vmatpush.msra.mxu0 %v116
    %126 = vmatpush.msra.mxu0 %v115
    %127 = vmatpush.msra.mxu0 %v114
    %128 = vmatpush.msra.mxu0 %v113
    %129 = vmatpush.msra.mxu0 %v112
    %130 = vmatpush.msra.mxu0 %v111
    %131 = vmatpush.msra.mxu0 %v110
    %132 = vmatpush.msra.mxu0 %v109
    %133 = vmatpush.msra.mxu0 %v108
    %134 = vmatpush.msra.mxu0 %v107
    %135 = vmatpush.msra.mxu0 %v106
    %136 = vmatpush.msra.mxu0 %v105
    %137 = vmatmul.f32.gmra.mxu0 %v33
    %v138 = vpop.f32.mrf.mxu0
    %v139 = vadd.f32 0.0, %v138
    %140 = vmatmul.f32.gmra.mxu0 %v34
    %v141 = vpop.f32.mrf.mxu0
    %v142 = vadd.f32 0.0, %v141
    %143 = vmatmul.f32.gmra.mxu0 %v35
    %v144 = vpop.f32.mrf.mxu0
    %v145 = vadd.f32 0.0, %v144
    %146 = vmatmul.f32.gmra.mxu0 %v36
    %v147 = vpop.f32.mrf.mxu0
    %v148 = vadd.f32 0.0, %v147
    %149 = vdwg.mxu0
    %v150 = vld [vmem:[%s6] sm:$0xff]
    %v151 = vld [vmem:[%s6 + $0x8] sm:$0xff]
    %v152 = vld [vmem:[%s6 + $0x10] sm:$0xff]
    %v153 = vld [vmem:[%s6 + $0x18] sm:$0xff]
    %v154 = vld [vmem:[%s6 + $0x20] sm:$0xff]
    %v155 = vld [vmem:[%s6 + $0x28] sm:$0xff]
    %v156 = vld [vmem:[%s6 + $0x30] sm:$0xff]
    %v157 = vld [vmem:[%s6 + $0x38] sm:$0xff]
    %v158 = vld [vmem:[%s6 + $0x40] sm:$0xff]
    %v159 = vld [vmem:[%s6 + $0x48] sm:$0xff]
    %v160 = vld [vmem:[%s6 + $0x50] sm:$0xff]
    %v161 = vld [vmem:[%s6 + $0x58] sm:$0xff]
    %v162 = vld [vmem:[%s6 + $0x60] sm:$0xff]
    %v163 = vld [vmem:[%s6 + $0x68] sm:$0xff]
    %v164 = vld [vmem:[%s6 + $0x70] sm:$0xff]
    %v165 = vld [vmem:[%s6 + $0x78] sm:$0xff]
    %166 = vmatpush.msra.mxu0 %v165
    %167 = vmatpush.msra.mxu0 %v164
    %168 = vmatpush.msra.mxu0 %v163
    %169 = vmatpush.msra.mxu0 %v162
    %170 = vmatpush.msra.mxu0 %v161
    %171 = vmatpush.msra.mxu0 %v160
    %172 = vmatpush.msra.mxu0 %v159
    %173 = vmatpush.msra.mxu0 %v158
    %174 = vmatpush.msra.mxu0 %v157
    %175 = vmatpush.msra.mxu0 %v156
    %176 = vmatpush.msra.mxu0 %v155
    %177 = vmatpush.msra.mxu0 %v154
    %178 = vmatpush.msra.mxu0 %v153
    %179 = vmatpush.msra.mxu0 %v152
    %180 = vmatpush.msra.mxu0 %v151
    %181 = vmatpush.msra.mxu0 %v150
    %182 = vmatmul.f32.gmra.mxu0 %v33
    %v183 = vpop.f32.mrf.mxu0
    %v184 = vadd.f32 0.0, %v183
    %185 = vmatmul.f32.gmra.mxu0 %v34
    %v186 = vpop.f32.mrf.mxu0
    %v187 = vadd.f32 0.0, %v186
    %188 = vmatmul.f32.gmra.mxu0 %v35
    %v189 = vpop.f32.mrf.mxu0
    %v190 = vadd.f32 0.0, %v189
    %191 = vmatmul.f32.gmra.mxu0 %v36
    %v192 = vpop.f32.mrf.mxu0
    %v193 = vadd.f32 0.0, %v192
    %194 = vdwg.mxu0
    %v195 = vld [vmem:[%s3] sm:$0xff]
    %v196 = vld [vmem:[%s3 + $0x8] sm:$0xff]
    %v197 = vld [vmem:[%s3 + $0x10] sm:$0xff]
    %v198 = vld [vmem:[%s3 + $0x18] sm:$0xff]
    %v199 = vld [vmem:[%s3 + $0x20] sm:$0xff]
    %v200 = vld [vmem:[%s3 + $0x28] sm:$0xff]
    %v201 = vld [vmem:[%s3 + $0x30] sm:$0xff]
    %v202 = vld [vmem:[%s3 + $0x38] sm:$0xff]
    %v203 = vld [vmem:[%s3 + $0x40] sm:$0xff]
    %v204 = vld [vmem:[%s3 + $0x48] sm:$0xff]
    %v205 = vld [vmem:[%s3 + $0x50] sm:$0xff]
    %v206 = vld [vmem:[%s3 + $0x58] sm:$0xff]
    %v207 = vld [vmem:[%s3 + $0x60] sm:$0xff]
    %v208 = vld [vmem:[%s3 + $0x68] sm:$0xff]
    %v209 = vld [vmem:[%s3 + $0x70] sm:$0xff]
    %v210 = vld [vmem:[%s3 + $0x78] sm:$0xff]
    %211 = vmatpush.msra.mxu0 %v210
    %212 = vmatpush.msra.mxu0 %v209
    %213 = vmatpush.msra.mxu0 %v208
    %214 = vmatpush.msra.mxu0 %v207
    %215 = vmatpush.msra.mxu0 %v206
    %216 = vmatpush.msra.mxu0 %v205
    %217 = vmatpush.msra.mxu0 %v204
    %218 = vmatpush.msra.mxu0 %v203
    %219 = vmatpush.msra.mxu0 %v202
    %220 = vmatpush.msra.mxu0 %v201
    %221 = vmatpush.msra.mxu0 %v200
    %222 = vmatpush.msra.mxu0 %v199
    %223 = vmatpush.msra.mxu0 %v198
    %224 = vmatpush.msra.mxu0 %v197
    %225 = vmatpush.msra.mxu0 %v196
    %226 = vmatpush.msra.mxu0 %v195
    %227 = vmatmul.f32.gmra.mxu0 %v39
    %v228 = vpop.f32.mrf.mxu0
    %v229 = vadd.f32 0.0, %v228
    %230 = vmatmul.f32.gmra.mxu0 %v40
    %v231 = vpop.f32.mrf.mxu0
    %v232 = vadd.f32 0.0, %v231
    %233 = vdwg.mxu0
    %v235 = vrot.slane %v103, 1
    %v236 = vperm.slane %v103, 0
    %v237 = vperm.slane %v235, 0
    %v240 = vadd.f32 %v229, %v236
    %v241 = vadd.f32 %v232, %v237
    %v242 = vld [vmem:[%s7] sm:$0xff]
    %v243 = vld [vmem:[%s7 + $0x8] sm:$0xff]
    %v244 = vld [vmem:[%s7 + $0x10] sm:$0xff]
    %v245 = vld [vmem:[%s7 + $0x18] sm:$0xff]
    %v246 = vld [vmem:[%s7 + $0x20] sm:$0xff]
    %v247 = vld [vmem:[%s7 + $0x28] sm:$0xff]
    %v248 = vld [vmem:[%s7 + $0x30] sm:$0xff]
    %v249 = vld [vmem:[%s7 + $0x38] sm:$0xff]
    %v250 = vld [vmem:[%s7 + $0x40] sm:$0xff]
    %v251 = vld [vmem:[%s7 + $0x48] sm:$0xff]
    %v252 = vld [vmem:[%s7 + $0x50] sm:$0xff]
    %v253 = vld [vmem:[%s7 + $0x58] sm:$0xff]
    %v254 = vld [vmem:[%s7 + $0x60] sm:$0xff]
    %v255 = vld [vmem:[%s7 + $0x68] sm:$0xff]
    %v256 = vld [vmem:[%s7 + $0x70] sm:$0xff]
    %v257 = vld [vmem:[%s7 + $0x78] sm:$0xff]
    %vm258 = vcmask 130048
    %v260 = vsel %vm258, %v240, 0
    %v263 = vsel %vm258, %v139, 0
    %v266 = vsel %vm258, %v142, 0
    %268 = vmatpush.xpose.msra.mxu0 0.0
    %269 = vmatpush.xpose.msra.mxu0 0.0
    %270 = vmatpush.xpose.msra.mxu0 0.0
    %271 = vmatpush.xpose.msra.mxu0 0.0
    %272 = vmatpush.xpose.msra.mxu0 0.0
    %273 = vmatpush.xpose.msra.mxu0 0.0
    %274 = vmatpush.xpose.msra.mxu0 0.0
    %275 = vmatpush.xpose.msra.mxu0 0.0
    %276 = vmatpush.xpose.msra.mxu0 0.0
    %277 = vmatpush.xpose.msra.mxu0 0.0
    %278 = vmatpush.xpose.msra.mxu0 0.0
    %279 = vmatpush.xpose.msra.mxu0 0.0
    %280 = vmatpush.xpose.msra.mxu0 0.0
    %281 = vmatpush.xpose.msra.mxu0 0.0
    %282 = vmatpush.xpose.msra.mxu0 %v266
    %283 = vmatpush.xpose.msra.mxu0 %v263
    %284 = vmatmul.f32.gmra.mxu0 %v260
    %v285 = vpop.f32.mrf.mxu0
    %v286 = vadd.f32 0.0, %v285
    %287 = vdwg.mxu0
    %v289 = vsel %vm258, %v241, 0
    %v292 = vsel %vm258, %v145, 0
    %v295 = vsel %vm258, %v148, 0
    %297 = vmatpush.xpose.msra.mxu0 0.0
    %298 = vmatpush.xpose.msra.mxu0 0.0
    %299 = vmatpush.xpose.msra.mxu0 0.0
    %300 = vmatpush.xpose.msra.mxu0 0.0
    %301 = vmatpush.xpose.msra.mxu0 0.0
    %302 = vmatpush.xpose.msra.mxu0 0.0
    %303 = vmatpush.xpose.msra.mxu0 0.0
    %304 = vmatpush.xpose.msra.mxu0 0.0
    %305 = vmatpush.xpose.msra.mxu0 0.0
    %306 = vmatpush.xpose.msra.mxu0 0.0
    %307 = vmatpush.xpose.msra.mxu0 0.0
    %308 = vmatpush.xpose.msra.mxu0 0.0
    %309 = vmatpush.xpose.msra.mxu0 0.0
    %310 = vmatpush.xpose.msra.mxu0 0.0
    %311 = vmatpush.xpose.msra.mxu0 %v295
    %312 = vmatpush.xpose.msra.mxu0 %v292
    %313 = vmatmul.f32.gmra.mxu0 %v289
    %v314 = vpop.f32.mrf.mxu0
    %v315 = vadd.f32 0.0, %v314
    %316 = vdwg.mxu0
    %v317 = vmul.f32 %v286, 0.25
    %v318 = vmul.f32 %v315, 0.25
    %v319 = vadd.f32 %v317, %v37
    %v320 = vadd.f32 %v318, %v38
    %v321 = vsel %vm258, %v319, -inf
    %322 = vmax.xlane.f32.xlu0 %v321
    %v323 = vpop.xlane.xlu0 %322
    %v324 = vsel %vm258, %v320, -inf
    %325 = vmax.xlane.f32.xlu0 %v324
    %v326 = vpop.xlane.xlu0 %325
    %v327 = vsub.f32 %v319, %v323
    %v328 = vsub.f32 %v320, %v326
    %v329 = vmul.f32 %v327, 1.442695
    %v330 = vpow.pop %v329
    %v331 = vmul.f32 %v328, 1.442695
    %v332 = vpow.pop %v331
    %v333 = vsel %vm258, %v330, 0.0
    %334 = vadd.xlane.f32.xlu0 %v333
    %v335 = vpop.xlane.xlu0 %334
    %v336 = vsel %vm258, %v332, 0.0
    %337 = vadd.xlane.f32.xlu0 %v336
    %v338 = vpop.xlane.xlu0 %337
    %v339 = vrcp.pop %v335
    %v340 = vmul.f32 %v335, %v339
    %v341 = vsub.f32 1.0, %v340
    %v342 = vmul.f32 %v339, %v341
    %v343 = vadd.f32 %v339, %v342
    %vm344 = vweird.f32 %v335
    %vm345 = vweird.f32 %v339
    %vm346 = vmor %vm344, %vm345
    %v347 = vsel %vm346, %v339, %v343
    %v348 = vand.u32 2147483647, %v335
    %vm349 = vcmp.eq.f32.partialorder %v348, 8.507059e+37
    %v350 = vand.u32 %v335, 2147483648
    %v351 = vor.u32 1.1754944e-38, %v350
    %v352 = vsel %vm349, %v351, %v347
    %v353 = vmul.f32 %v330, %v352
    %v354 = vrcp.pop %v338
    %v355 = vmul.f32 %v338, %v354
    %v356 = vsub.f32 1.0, %v355
    %v357 = vmul.f32 %v354, %v356
    %v358 = vadd.f32 %v354, %v357
    %vm359 = vweird.f32 %v338
    %vm360 = vweird.f32 %v354
    %vm361 = vmor %vm359, %vm360
    %v362 = vsel %vm361, %v354, %v358
    %v363 = vand.u32 2147483647, %v338
    %vm364 = vcmp.eq.f32.partialorder %v363, 8.507059e+37
    %v365 = vand.u32 %v338, 2147483648
    %v366 = vor.u32 1.1754944e-38, %v365
    %v367 = vsel %vm364, %v366, %v362
    %v368 = vmul.f32 %v332, %v367
    %v370 = vsel %vm258, %v353, 0
    %372 = vmatpush.msra.mxu0 0.0
    %373 = vmatpush.msra.mxu0 0.0
    %374 = vmatpush.msra.mxu0 0.0
    %375 = vmatpush.msra.mxu0 0.0
    %376 = vmatpush.msra.mxu0 0.0
    %377 = vmatpush.msra.mxu0 0.0
    %378 = vmatpush.msra.mxu0 0.0
    %379 = vmatpush.msra.mxu0 0.0
    %380 = vmatpush.msra.mxu0 0.0
    %381 = vmatpush.msra.mxu0 0.0
    %382 = vmatpush.msra.mxu0 0.0
    %383 = vmatpush.msra.mxu0 0.0
    %384 = vmatpush.msra.mxu0 0.0
    %385 = vmatpush.msra.mxu0 0.0
    %386 = vmatpush.msra.mxu0 %v187
    %387 = vmatpush.msra.mxu0 %v184
    %388 = vmatmul.f32.gmra.mxu0 %v370
    %v389 = vpop.f32.mrf.mxu0
    %v390 = vadd.f32 0.0, %v389
    %391 = vdwg.mxu0
    %v393 = vsel %vm258, %v368, 0
    %395 = vmatpush.msra.mxu0 0.0
    %396 = vmatpush.msra.mxu0 0.0
    %397 = vmatpush.msra.mxu0 0.0
    %398 = vmatpush.msra.mxu0 0.0
    %399 = vmatpush.msra.mxu0 0.0
    %400 = vmatpush.msra.mxu0 0.0
    %401 = vmatpush.msra.mxu0 0.0
    %402 = vmatpush.msra.mxu0 0.0
    %403 = vmatpush.msra.mxu0 0.0
    %404 = vmatpush.msra.mxu0 0.0
    %405 = vmatpush.msra.mxu0 0.0
    %406 = vmatpush.msra.mxu0 0.0
    %407 = vmatpush.msra.mxu0 0.0
    %408 = vmatpush.msra.mxu0 0.0
    %409 = vmatpush.msra.mxu0 %v193
    %410 = vmatpush.msra.mxu0 %v190
    %411 = vmatmul.f32.gmra.mxu0 %v393
    %v412 = vpop.f32.mrf.mxu0
    %v413 = vadd.f32 0.0, %v412
    %414 = vdwg.mxu0
    %415 = vrot.lane.b32.xlu0 %v240, 112
    %v416 = vpop.permute.xlu0 %415
    %417 = vrot.lane.b32.xlu0 %v139, 112
    %v418 = vpop.permute.xlu0 %417
    %419 = vrot.lane.b32.xlu0 %v142, 112
    %v420 = vpop.permute.xlu0 %419
    %v421 = vsel %vm258, %v416, 0
    %v423 = vsel %vm258, %v418, 0
    %v425 = vsel %vm258, %v420, 0
    %427 = vmatpush.xpose.msra.mxu0 0.0
    %428 = vmatpush.xpose.msra.mxu0 0.0
    %429 = vmatpush.xpose.msra.mxu0 0.0
    %430 = vmatpush.xpose.msra.mxu0 0.0
    %431 = vmatpush.xpose.msra.mxu0 0.0
    %432 = vmatpush.xpose.msra.mxu0 0.0
    %433 = vmatpush.xpose.msra.mxu0 0.0
    %434 = vmatpush.xpose.msra.mxu0 0.0
    %435 = vmatpush.xpose.msra.mxu0 0.0
    %436 = vmatpush.xpose.msra.mxu0 0.0
    %437 = vmatpush.xpose.msra.mxu0 0.0
    %438 = vmatpush.xpose.msra.mxu0 0.0
    %439 = vmatpush.xpose.msra.mxu0 0.0
    %440 = vmatpush.xpose.msra.mxu0 0.0
    %441 = vmatpush.xpose.msra.mxu0 %v425
    %442 = vmatpush.xpose.msra.mxu0 %v423
    %443 = vmatmul.f32.gmra.mxu0 %v421
    %v444 = vpop.f32.mrf.mxu0
    %v445 = vadd.f32 0.0, %v444
    %446 = vdwg.mxu0
    %447 = vrot.lane.b32.xlu0 %v241, 112
    %v448 = vpop.permute.xlu0 %447
    %449 = vrot.lane.b32.xlu0 %v145, 112
    %v450 = vpop.permute.xlu0 %449
    %451 = vrot.lane.b32.xlu0 %v148, 112
    %v452 = vpop.permute.xlu0 %451
    %v453 = vsel %vm258, %v448, 0
    %v455 = vsel %vm258, %v450, 0
    %v457 = vsel %vm258, %v452, 0
    %459 = vmatpush.xpose.msra.mxu0 0.0
    %460 = vmatpush.xpose.msra.mxu0 0.0
    %461 = vmatpush.xpose.msra.mxu0 0.0
    %462 = vmatpush.xpose.msra.mxu0 0.0
    %463 = vmatpush.xpose.msra.mxu0 0.0
    %464 = vmatpush.xpose.msra.mxu0 0.0
    %465 = vmatpush.xpose.msra.mxu0 0.0
    %466 = vmatpush.xpose.msra.mxu0 0.0
    %467 = vmatpush.xpose.msra.mxu0 0.0
    %468 = vmatpush.xpose.msra.mxu0 0.0
    %469 = vmatpush.xpose.msra.mxu0 0.0
    %470 = vmatpush.xpose.msra.mxu0 0.0
    %471 = vmatpush.xpose.msra.mxu0 0.0
    %472 = vmatpush.xpose.msra.mxu0 0.0
    %473 = vmatpush.xpose.msra.mxu0 %v457
    %474 = vmatpush.xpose.msra.mxu0 %v455
    %475 = vmatmul.f32.gmra.mxu0 %v453
    %v476 = vpop.f32.mrf.mxu0
    %v477 = vadd.f32 0.0, %v476
    %478 = vdwg.mxu0
    %v479 = vmul.f32 %v445, 0.25
    %v480 = vmul.f32 %v477, 0.25
    %v481 = vadd.f32 %v479, %v37
    %v482 = vadd.f32 %v480, %v38
    %v483 = vsel %vm258, %v481, -inf
    %484 = vmax.xlane.f32.xlu0 %v483
    %v485 = vpop.xlane.xlu0 %484
    %v486 = vsel %vm258, %v482, -inf
    %487 = vmax.xlane.f32.xlu0 %v486
    %v488 = vpop.xlane.xlu0 %487
    %v489 = vsub.f32 %v481, %v485
    %v490 = vsub.f32 %v482, %v488
    %v491 = vmul.f32 %v489, 1.442695
    %v492 = vpow.pop %v491
    %v493 = vmul.f32 %v490, 1.442695
    %v494 = vpow.pop %v493
    %v495 = vsel %vm258, %v492, 0.0
    %496 = vadd.xlane.f32.xlu0 %v495
    %v497 = vpop.xlane.xlu0 %496
    %v498 = vsel %vm258, %v494, 0.0
    %499 = vadd.xlane.f32.xlu0 %v498
    %v500 = vpop.xlane.xlu0 %499
    %v501 = vrcp.pop %v497
    %v502 = vmul.f32 %v497, %v501
    %v503 = vsub.f32 1.0, %v502
    %v504 = vmul.f32 %v501, %v503
    %v505 = vadd.f32 %v501, %v504
    %vm506 = vweird.f32 %v497
    %vm507 = vweird.f32 %v501
    %vm508 = vmor %vm506, %vm507
    %v509 = vsel %vm508, %v501, %v505
    %v510 = vand.u32 2147483647, %v497
    %vm511 = vcmp.eq.f32.partialorder %v510, 8.507059e+37
    %v512 = vand.u32 %v497, 2147483648
    %v513 = vor.u32 1.1754944e-38, %v512
    %v514 = vsel %vm511, %v513, %v509
    %v515 = vmul.f32 %v492, %v514
    %v516 = vrcp.pop %v500
    %v517 = vmul.f32 %v500, %v516
    %v518 = vsub.f32 1.0, %v517
    %v519 = vmul.f32 %v516, %v518
    %v520 = vadd.f32 %v516, %v519
    %vm521 = vweird.f32 %v500
    %vm522 = vweird.f32 %v516
    %vm523 = vmor %vm521, %vm522
    %v524 = vsel %vm523, %v516, %v520
    %v525 = vand.u32 2147483647, %v500
    %vm526 = vcmp.eq.f32.partialorder %v525, 8.507059e+37
    %v527 = vand.u32 %v500, 2147483648
    %v528 = vor.u32 1.1754944e-38, %v527
    %v529 = vsel %vm526, %v528, %v524
    %v530 = vmul.f32 %v494, %v529
    %533 = vrot.lane.b32.xlu0 %v184, 112
    %v534 = vpop.permute.xlu0 %533
    %535 = vrot.lane.b32.xlu0 %v187, 112
    %v536 = vpop.permute.xlu0 %535
    %v540 = vsel %vm258, %v515, 0
    %542 = vmatpush.msra.mxu0 0.0
    %543 = vmatpush.msra.mxu0 0.0
    %544 = vmatpush.msra.mxu0 0.0
    %545 = vmatpush.msra.mxu0 0.0
    %546 = vmatpush.msra.mxu0 0.0
    %547 = vmatpush.msra.mxu0 0.0
    %548 = vmatpush.msra.mxu0 0.0
    %549 = vmatpush.msra.mxu0 0.0
    %550 = vmatpush.msra.mxu0 0.0
    %551 = vmatpush.msra.mxu0 0.0
    %552 = vmatpush.msra.mxu0 0.0
    %553 = vmatpush.msra.mxu0 0.0
    %554 = vmatpush.msra.mxu0 0.0
    %555 = vmatpush.msra.mxu0 0.0
    %556 = vmatpush.msra.mxu0 %v536
    %557 = vmatpush.msra.mxu0 %v534
    %558 = vmatmul.f32.gmra.mxu0 %v540
    %v559 = vpop.f32.mrf.mxu0
    %v560 = vadd.f32 0.0, %v559
    %561 = vdwg.mxu0
    %564 = vrot.lane.b32.xlu0 %v190, 112
    %v565 = vpop.permute.xlu0 %564
    %566 = vrot.lane.b32.xlu0 %v193, 112
    %v567 = vpop.permute.xlu0 %566
    %v571 = vsel %vm258, %v530, 0
    %573 = vmatpush.msra.mxu0 0.0
    %574 = vmatpush.msra.mxu0 0.0
    %575 = vmatpush.msra.mxu0 0.0
    %576 = vmatpush.msra.mxu0 0.0
    %577 = vmatpush.msra.mxu0 0.0
    %578 = vmatpush.msra.mxu0 0.0
    %579 = vmatpush.msra.mxu0 0.0
    %580 = vmatpush.msra.mxu0 0.0
    %581 = vmatpush.msra.mxu0 0.0
    %582 = vmatpush.msra.mxu0 0.0
    %583 = vmatpush.msra.mxu0 0.0
    %584 = vmatpush.msra.mxu0 0.0
    %585 = vmatpush.msra.mxu0 0.0
    %586 = vmatpush.msra.mxu0 0.0
    %587 = vmatpush.msra.mxu0 %v567
    %588 = vmatpush.msra.mxu0 %v565
    %589 = vmatmul.f32.gmra.mxu0 %v571
    %v590 = vpop.f32.mrf.mxu0
    %v591 = vadd.f32 0.0, %v590
    %592 = vdwg.mxu0
    %v594 = vsel %vm258, %v560, 0
    %v597 = vsel %vm258, %v591, 0
    %599 = vmatpush.msra.mxu0 0.0
    %600 = vmatpush.msra.mxu0 0.0
    %601 = vmatpush.msra.mxu0 0.0
    %602 = vmatpush.msra.mxu0 0.0
    %603 = vmatpush.msra.mxu0 0.0
    %604 = vmatpush.msra.mxu0 0.0
    %605 = vmatpush.msra.mxu0 0.0
    %606 = vmatpush.msra.mxu0 0.0
    %607 = vmatpush.msra.mxu0 0.0
    %608 = vmatpush.msra.mxu0 0.0
    %609 = vmatpush.msra.mxu0 0.0
    %610 = vmatpush.msra.mxu0 0.0
    %611 = vmatpush.msra.mxu0 0.0
    %612 = vmatpush.msra.mxu0 0.0
    %613 = vmatpush.msra.mxu0 %v245
    %614 = vmatpush.msra.mxu0 %v244
    %615 = vmatmul.f32.gmra.mxu0 %v594
    %v616 = vpop.f32.mrf.mxu0
    %v617 = vadd.f32 0.0, %v616
    %618 = vmatmul.f32.gmra.mxu0 %v597
    %v619 = vpop.f32.mrf.mxu0
    %v620 = vadd.f32 0.0, %v619
    %621 = vdwg.mxu0
    %v623 = vsel %vm258, %v390, 0
    %v626 = vsel %vm258, %v413, 0
    %628 = vmatpush.msra.mxu0 0.0
    %629 = vmatpush.msra.mxu0 0.0
    %630 = vmatpush.msra.mxu0 0.0
    %631 = vmatpush.msra.mxu0 0.0
    %632 = vmatpush.msra.mxu0 0.0
    %633 = vmatpush.msra.mxu0 0.0
    %634 = vmatpush.msra.mxu0 0.0
    %635 = vmatpush.msra.mxu0 0.0
    %636 = vmatpush.msra.mxu0 0.0
    %637 = vmatpush.msra.mxu0 0.0
    %638 = vmatpush.msra.mxu0 0.0
    %639 = vmatpush.msra.mxu0 0.0
    %640 = vmatpush.msra.mxu0 0.0
    %641 = vmatpush.msra.mxu0 0.0
    %642 = vmatpush.msra.mxu0 %v243
    %643 = vmatpush.msra.mxu0 %v242
    %644 = vmatmul.f32.gmra.mxu0 %v623
    %v645 = vpop.f32.mrf.mxu0
    %v646 = vadd.f32 %v617, %v645
    %647 = vmatmul.f32.gmra.mxu0 %v626
    %v648 = vpop.f32.mrf.mxu0
    %v649 = vadd.f32 %v620, %v648
    %650 = vdwg.mxu0
    %651 = vrot.lane.b32.xlu0 %v240, 96
    %v652 = vpop.permute.xlu0 %651
    %653 = vrot.lane.b32.xlu0 %v139, 96
    %v654 = vpop.permute.xlu0 %653
    %655 = vrot.lane.b32.xlu0 %v142, 96
    %v656 = vpop.permute.xlu0 %655
    %v657 = vsel %vm258, %v652, 0
    %v659 = vsel %vm258, %v654, 0
    %v661 = vsel %vm258, %v656, 0
    %663 = vmatpush.xpose.msra.mxu0 0.0
    %664 = vmatpush.xpose.msra.mxu0 0.0
    %665 = vmatpush.xpose.msra.mxu0 0.0
    %666 = vmatpush.xpose.msra.mxu0 0.0
    %667 = vmatpush.xpose.msra.mxu0 0.0
    %668 = vmatpush.xpose.msra.mxu0 0.0
    %669 = vmatpush.xpose.msra.mxu0 0.0
    %670 = vmatpush.xpose.msra.mxu0 0.0
    %671 = vmatpush.xpose.msra.mxu0 0.0
    %672 = vmatpush.xpose.msra.mxu0 0.0
    %673 = vmatpush.xpose.msra.mxu0 0.0
    %674 = vmatpush.xpose.msra.mxu0 0.0
    %675 = vmatpush.xpose.msra.mxu0 0.0
    %676 = vmatpush.xpose.msra.mxu0 0.0
    %677 = vmatpush.xpose.msra.mxu0 %v661
    %678 = vmatpush.xpose.msra.mxu0 %v659
    %679 = vmatmul.f32.gmra.mxu0 %v657
    %v680 = vpop.f32.mrf.mxu0
    %v681 = vadd.f32 0.0, %v680
    %682 = vdwg.mxu0
    %683 = vrot.lane.b32.xlu0 %v241, 96
    %v684 = vpop.permute.xlu0 %683
    %685 = vrot.lane.b32.xlu0 %v145, 96
    %v686 = vpop.permute.xlu0 %685
    %687 = vrot.lane.b32.xlu0 %v148, 96
    %v688 = vpop.permute.xlu0 %687
    %v689 = vsel %vm258, %v684, 0
    %v691 = vsel %vm258, %v686, 0
    %v693 = vsel %vm258, %v688, 0
    %695 = vmatpush.xpose.msra.mxu0 0.0
    %696 = vmatpush.xpose.msra.mxu0 0.0
    %697 = vmatpush.xpose.msra.mxu0 0.0
    %698 = vmatpush.xpose.msra.mxu0 0.0
    %699 = vmatpush.xpose.msra.mxu0 0.0
    %700 = vmatpush.xpose.msra.mxu0 0.0
    %701 = vmatpush.xpose.msra.mxu0 0.0
    %702 = vmatpush.xpose.msra.mxu0 0.0
    %703 = vmatpush.xpose.msra.mxu0 0.0
    %704 = vmatpush.xpose.msra.mxu0 0.0
    %705 = vmatpush.xpose.msra.mxu0 0.0
    %706 = vmatpush.xpose.msra.mxu0 0.0
    %707 = vmatpush.xpose.msra.mxu0 0.0
    %708 = vmatpush.xpose.msra.mxu0 0.0
    %709 = vmatpush.xpose.msra.mxu0 %v693
    %710 = vmatpush.xpose.msra.mxu0 %v691
    %711 = vmatmul.f32.gmra.mxu0 %v689
    %v712 = vpop.f32.mrf.mxu0
    %v713 = vadd.f32 0.0, %v712
    %714 = vdwg.mxu0
    %v715 = vmul.f32 %v681, 0.25
    %v716 = vmul.f32 %v713, 0.25
    %v717 = vadd.f32 %v715, %v37
    %v718 = vadd.f32 %v716, %v38
    %v719 = vsel %vm258, %v717, -inf
    %720 = vmax.xlane.f32.xlu0 %v719
    %v721 = vpop.xlane.xlu0 %720
    %v722 = vsel %vm258, %v718, -inf
    %723 = vmax.xlane.f32.xlu0 %v722
    %v724 = vpop.xlane.xlu0 %723
    %v725 = vsub.f32 %v717, %v721
    %v726 = vsub.f32 %v718, %v724
    %v727 = vmul.f32 %v725, 1.442695
    %v728 = vpow.pop %v727
    %v729 = vmul.f32 %v726, 1.442695
    %v730 = vpow.pop %v729
    %v731 = vsel %vm258, %v728, 0.0
    %732 = vadd.xlane.f32.xlu0 %v731
    %v733 = vpop.xlane.xlu0 %732
    %v734 = vsel %vm258, %v730, 0.0
    %735 = vadd.xlane.f32.xlu0 %v734
    %v736 = vpop.xlane.xlu0 %735
    %v737 = vrcp.pop %v733
    %v738 = vmul.f32 %v733, %v737
    %v739 = vsub.f32 1.0, %v738
    %v740 = vmul.f32 %v737, %v739
    %v741 = vadd.f32 %v737, %v740
    %vm742 = vweird.f32 %v733
    %vm743 = vweird.f32 %v737
    %vm744 = vmor %vm742, %vm743
    %v745 = vsel %vm744, %v737, %v741
    %v746 = vand.u32 2147483647, %v733
    %vm747 = vcmp.eq.f32.partialorder %v746, 8.507059e+37
    %v748 = vand.u32 %v733, 2147483648
    %v749 = vor.u32 1.1754944e-38, %v748
    %v750 = vsel %vm747, %v749, %v745
    %v751 = vmul.f32 %v728, %v750
    %v752 = vrcp.pop %v736
    %v753 = vmul.f32 %v736, %v752
    %v754 = vsub.f32 1.0, %v753
    %v755 = vmul.f32 %v752, %v754
    %v756 = vadd.f32 %v752, %v755
    %vm757 = vweird.f32 %v736
    %vm758 = vweird.f32 %v752
    %vm759 = vmor %vm757, %vm758
    %v760 = vsel %vm759, %v752, %v756
    %v761 = vand.u32 2147483647, %v736
    %vm762 = vcmp.eq.f32.partialorder %v761, 8.507059e+37
    %v763 = vand.u32 %v736, 2147483648
    %v764 = vor.u32 1.1754944e-38, %v763
    %v765 = vsel %vm762, %v764, %v760
    %v766 = vmul.f32 %v730, %v765
    %767 = vrot.lane.b32.xlu0 %v184, 96
    %v768 = vpop.permute.xlu0 %767
    %769 = vrot.lane.b32.xlu0 %v187, 96
    %v770 = vpop.permute.xlu0 %769
    %v774 = vsel %vm258, %v751, 0
    %776 = vmatpush.msra.mxu0 0.0
    %777 = vmatpush.msra.mxu0 0.0
    %778 = vmatpush.msra.mxu0 0.0
    %779 = vmatpush.msra.mxu0 0.0
    %780 = vmatpush.msra.mxu0 0.0
    %781 = vmatpush.msra.mxu0 0.0
    %782 = vmatpush.msra.mxu0 0.0
    %783 = vmatpush.msra.mxu0 0.0
    %784 = vmatpush.msra.mxu0 0.0
    %785 = vmatpush.msra.mxu0 0.0
    %786 = vmatpush.msra.mxu0 0.0
    %787 = vmatpush.msra.mxu0 0.0
    %788 = vmatpush.msra.mxu0 0.0
    %789 = vmatpush.msra.mxu0 0.0
    %790 = vmatpush.msra.mxu0 %v770
    %791 = vmatpush.msra.mxu0 %v768
    %792 = vmatmul.f32.gmra.mxu0 %v774
    %v793 = vpop.f32.mrf.mxu0
    %v794 = vadd.f32 0.0, %v793
    %795 = vdwg.mxu0
    %796 = vrot.lane.b32.xlu0 %v190, 96
    %v797 = vpop.permute.xlu0 %796
    %798 = vrot.lane.b32.xlu0 %v193, 96
    %v799 = vpop.permute.xlu0 %798
    %v803 = vsel %vm258, %v766, 0
    %805 = vmatpush.msra.mxu0 0.0
    %806 = vmatpush.msra.mxu0 0.0
    %807 = vmatpush.msra.mxu0 0.0
    %808 = vmatpush.msra.mxu0 0.0
    %809 = vmatpush.msra.mxu0 0.0
    %810 = vmatpush.msra.mxu0 0.0
    %811 = vmatpush.msra.mxu0 0.0
    %812 = vmatpush.msra.mxu0 0.0
    %813 = vmatpush.msra.mxu0 0.0
    %814 = vmatpush.msra.mxu0 0.0
    %815 = vmatpush.msra.mxu0 0.0
    %816 = vmatpush.msra.mxu0 0.0
    %817 = vmatpush.msra.mxu0 0.0
    %818 = vmatpush.msra.mxu0 0.0
    %819 = vmatpush.msra.mxu0 %v799
    %820 = vmatpush.msra.mxu0 %v797
    %821 = vmatmul.f32.gmra.mxu0 %v803
    %v822 = vpop.f32.mrf.mxu0
    %v823 = vadd.f32 0.0, %v822
    %824 = vdwg.mxu0
    %v826 = vsel %vm258, %v794, 0
    %v829 = vsel %vm258, %v823, 0
    %831 = vmatpush.msra.mxu0 0.0
    %832 = vmatpush.msra.mxu0 0.0
    %833 = vmatpush.msra.mxu0 0.0
    %834 = vmatpush.msra.mxu0 0.0
    %835 = vmatpush.msra.mxu0 0.0
    %836 = vmatpush.msra.mxu0 0.0
    %837 = vmatpush.msra.mxu0 0.0
    %838 = vmatpush.msra.mxu0 0.0
    %839 = vmatpush.msra.mxu0 0.0
    %840 = vmatpush.msra.mxu0 0.0
    %841 = vmatpush.msra.mxu0 0.0
    %842 = vmatpush.msra.mxu0 0.0
    %843 = vmatpush.msra.mxu0 0.0
    %844 = vmatpush.msra.mxu0 0.0
    %845 = vmatpush.msra.mxu0 %v247
    %846 = vmatpush.msra.mxu0 %v246
    %847 = vmatmul.f32.gmra.mxu0 %v826
    %v848 = vpop.f32.mrf.mxu0
    %v849 = vadd.f32 0.0, %v848
    %850 = vmatmul.f32.gmra.mxu0 %v829
    %v851 = vpop.f32.mrf.mxu0
    %v852 = vadd.f32 0.0, %v851
    %853 = vdwg.mxu0
    %v854 = vadd.f32 %v646, %v849
    %v855 = vadd.f32 %v649, %v852
    %856 = vrot.lane.b32.xlu0 %v240, 80
    %v857 = vpop.permute.xlu0 %856
    %858 = vrot.lane.b32.xlu0 %v139, 80
    %v859 = vpop.permute.xlu0 %858
    %860 = vrot.lane.b32.xlu0 %v142, 80
    %v861 = vpop.permute.xlu0 %860
    %v862 = vsel %vm258, %v857, 0
    %v864 = vsel %vm258, %v859, 0
    %v866 = vsel %vm258, %v861, 0
    %868 = vmatpush.xpose.msra.mxu0 0.0
    %869 = vmatpush.xpose.msra.mxu0 0.0
    %870 = vmatpush.xpose.msra.mxu0 0.0
    %871 = vmatpush.xpose.msra.mxu0 0.0
    %872 = vmatpush.xpose.msra.mxu0 0.0
    %873 = vmatpush.xpose.msra.mxu0 0.0
    %874 = vmatpush.xpose.msra.mxu0 0.0
    %875 = vmatpush.xpose.msra.mxu0 0.0
    %876 = vmatpush.xpose.msra.mxu0 0.0
    %877 = vmatpush.xpose.msra.mxu0 0.0
    %878 = vmatpush.xpose.msra.mxu0 0.0
    %879 = vmatpush.xpose.msra.mxu0 0.0
    %880 = vmatpush.xpose.msra.mxu0 0.0
    %881 = vmatpush.xpose.msra.mxu0 0.0
    %882 = vmatpush.xpose.msra.mxu0 %v866
    %883 = vmatpush.xpose.msra.mxu0 %v864
    %884 = vmatmul.f32.gmra.mxu0 %v862
    %v885 = vpop.f32.mrf.mxu0
    %v886 = vadd.f32 0.0, %v885
    %887 = vdwg.mxu0
    %888 = vrot.lane.b32.xlu0 %v241, 80
    %v889 = vpop.permute.xlu0 %888
    %890 = vrot.lane.b32.xlu0 %v145, 80
    %v891 = vpop.permute.xlu0 %890
    %892 = vrot.lane.b32.xlu0 %v148, 80
    %v893 = vpop.permute.xlu0 %892
    %v894 = vsel %vm258, %v889, 0
    %v896 = vsel %vm258, %v891, 0
    %v898 = vsel %vm258, %v893, 0
    %900 = vmatpush.xpose.msra.mxu0 0.0
    %901 = vmatpush.xpose.msra.mxu0 0.0
    %902 = vmatpush.xpose.msra.mxu0 0.0
    %903 = vmatpush.xpose.msra.mxu0 0.0
    %904 = vmatpush.xpose.msra.mxu0 0.0
    %905 = vmatpush.xpose.msra.mxu0 0.0
    %906 = vmatpush.xpose.msra.mxu0 0.0
    %907 = vmatpush.xpose.msra.mxu0 0.0
    %908 = vmatpush.xpose.msra.mxu0 0.0
    %909 = vmatpush.xpose.msra.mxu0 0.0
    %910 = vmatpush.xpose.msra.mxu0 0.0
    %911 = vmatpush.xpose.msra.mxu0 0.0
    %912 = vmatpush.xpose.msra.mxu0 0.0
    %913 = vmatpush.xpose.msra.mxu0 0.0
    %914 = vmatpush.xpose.msra.mxu0 %v898
    %915 = vmatpush.xpose.msra.mxu0 %v896
    %916 = vmatmul.f32.gmra.mxu0 %v894
    %v917 = vpop.f32.mrf.mxu0
    %v918 = vadd.f32 0.0, %v917
    %919 = vdwg.mxu0
    %v920 = vmul.f32 %v886, 0.25
    %v921 = vmul.f32 %v918, 0.25
    %v922 = vadd.f32 %v920, %v37
    %v923 = vadd.f32 %v921, %v38
    %v924 = vsel %vm258, %v922, -inf
    %925 = vmax.xlane.f32.xlu0 %v924
    %v926 = vpop.xlane.xlu0 %925
    %v927 = vsel %vm258, %v923, -inf
    %928 = vmax.xlane.f32.xlu0 %v927
    %v929 = vpop.xlane.xlu0 %928
    %v930 = vsub.f32 %v922, %v926
    %v931 = vsub.f32 %v923, %v929
    %v932 = vmul.f32 %v930, 1.442695
    %v933 = vpow.pop %v932
    %v934 = vmul.f32 %v931, 1.442695
    %v935 = vpow.pop %v934
    %v936 = vsel %vm258, %v933, 0.0
    %937 = vadd.xlane.f32.xlu0 %v936
    %v938 = vpop.xlane.xlu0 %937
    %v939 = vsel %vm258, %v935, 0.0
    %940 = vadd.xlane.f32.xlu0 %v939
    %v941 = vpop.xlane.xlu0 %940
    %v942 = vrcp.pop %v938
    %v943 = vmul.f32 %v938, %v942
    %v944 = vsub.f32 1.0, %v943
    %v945 = vmul.f32 %v942, %v944
    %v946 = vadd.f32 %v942, %v945
    %vm947 = vweird.f32 %v938
    %vm948 = vweird.f32 %v942
    %vm949 = vmor %vm947, %vm948
    %v950 = vsel %vm949, %v942, %v946
    %v951 = vand.u32 2147483647, %v938
    %vm952 = vcmp.eq.f32.partialorder %v951, 8.507059e+37
    %v953 = vand.u32 %v938, 2147483648
    %v954 = vor.u32 1.1754944e-38, %v953
    %v955 = vsel %vm952, %v954, %v950
    %v956 = vmul.f32 %v933, %v955
    %v957 = vrcp.pop %v941
    %v958 = vmul.f32 %v941, %v957
    %v959 = vsub.f32 1.0, %v958
    %v960 = vmul.f32 %v957, %v959
    %v961 = vadd.f32 %v957, %v960
    %vm962 = vweird.f32 %v941
    %vm963 = vweird.f32 %v957
    %vm964 = vmor %vm962, %vm963
    %v965 = vsel %vm964, %v957, %v961
    %v966 = vand.u32 2147483647, %v941
    %vm967 = vcmp.eq.f32.partialorder %v966, 8.507059e+37
    %v968 = vand.u32 %v941, 2147483648
    %v969 = vor.u32 1.1754944e-38, %v968
    %v970 = vsel %vm967, %v969, %v965
    %v971 = vmul.f32 %v935, %v970
    %972 = vrot.lane.b32.xlu0 %v184, 80
    %v973 = vpop.permute.xlu0 %972
    %974 = vrot.lane.b32.xlu0 %v187, 80
    %v975 = vpop.permute.xlu0 %974
    %v979 = vsel %vm258, %v956, 0
    %981 = vmatpush.msra.mxu0 0.0
    %982 = vmatpush.msra.mxu0 0.0
    %983 = vmatpush.msra.mxu0 0.0
    %984 = vmatpush.msra.mxu0 0.0
    %985 = vmatpush.msra.mxu0 0.0
    %986 = vmatpush.msra.mxu0 0.0
    %987 = vmatpush.msra.mxu0 0.0
    %988 = vmatpush.msra.mxu0 0.0
    %989 = vmatpush.msra.mxu0 0.0
    %990 = vmatpush.msra.mxu0 0.0
    %991 = vmatpush.msra.mxu0 0.0
    %992 = vmatpush.msra.mxu0 0.0
    %993 = vmatpush.msra.mxu0 0.0
    %994 = vmatpush.msra.mxu0 0.0
    %995 = vmatpush.msra.mxu0 %v975
    %996 = vmatpush.msra.mxu0 %v973
    %997 = vmatmul.f32.gmra.mxu0 %v979
    %v998 = vpop.f32.mrf.mxu0
    %v999 = vadd.f32 0.0, %v998
    %1000 = vdwg.mxu0
    %1001 = vrot.lane.b32.xlu0 %v190, 80
    %v1002 = vpop.permute.xlu0 %1001
    %1003 = vrot.lane.b32.xlu0 %v193, 80
    %v1004 = vpop.permute.xlu0 %1003
    %v1008 = vsel %vm258, %v971, 0
    %1010 = vmatpush.msra.mxu0 0.0
    %1011 = vmatpush.msra.mxu0 0.0
    %1012 = vmatpush.msra.mxu0 0.0
    %1013 = vmatpush.msra.mxu0 0.0
    %1014 = vmatpush.msra.mxu0 0.0
    %1015 = vmatpush.msra.mxu0 0.0
    %1016 = vmatpush.msra.mxu0 0.0
    %1017 = vmatpush.msra.mxu0 0.0
    %1018 = vmatpush.msra.mxu0 0.0
    %1019 = vmatpush.msra.mxu0 0.0
    %1020 = vmatpush.msra.mxu0 0.0
    %1021 = vmatpush.msra.mxu0 0.0
    %1022 = vmatpush.msra.mxu0 0.0
    %1023 = vmatpush.msra.mxu0 0.0
    %1024 = vmatpush.msra.mxu0 %v1004
    %1025 = vmatpush.msra.mxu0 %v1002
    %1026 = vmatmul.f32.gmra.mxu0 %v1008
    %v1027 = vpop.f32.mrf.mxu0
    %v1028 = vadd.f32 0.0, %v1027
    %1029 = vdwg.mxu0
    %v1031 = vsel %vm258, %v999, 0
    %v1034 = vsel %vm258, %v1028, 0
    %1036 = vmatpush.msra.mxu0 0.0
    %1037 = vmatpush.msra.mxu0 0.0
    %1038 = vmatpush.msra.mxu0 0.0
    %1039 = vmatpush.msra.mxu0 0.0
    %1040 = vmatpush.msra.mxu0 0.0
    %1041 = vmatpush.msra.mxu0 0.0
    %1042 = vmatpush.msra.mxu0 0.0
    %1043 = vmatpush.msra.mxu0 0.0
    %1044 = vmatpush.msra.mxu0 0.0
    %1045 = vmatpush.msra.mxu0 0.0
    %1046 = vmatpush.msra.mxu0 0.0
    %1047 = vmatpush.msra.mxu0 0.0
    %1048 = vmatpush.msra.mxu0 0.0
    %1049 = vmatpush.msra.mxu0 0.0
    %1050 = vmatpush.msra.mxu0 %v249
    %1051 = vmatpush.msra.mxu0 %v248
    %1052 = vmatmul.f32.gmra.mxu0 %v1031
    %v1053 = vpop.f32.mrf.mxu0
    %v1054 = vadd.f32 0.0, %v1053
    %1055 = vmatmul.f32.gmra.mxu0 %v1034
    %v1056 = vpop.f32.mrf.mxu0
    %v1057 = vadd.f32 0.0, %v1056
    %1058 = vdwg.mxu0
    %v1059 = vadd.f32 %v854, %v1054
    %v1060 = vadd.f32 %v855, %v1057
    %1061 = vrot.lane.b32.xlu0 %v240, 64
    %v1062 = vpop.permute.xlu0 %1061
    %1063 = vrot.lane.b32.xlu0 %v139, 64
    %v1064 = vpop.permute.xlu0 %1063
    %1065 = vrot.lane.b32.xlu0 %v142, 64
    %v1066 = vpop.permute.xlu0 %1065
    %v1067 = vsel %vm258, %v1062, 0
    %v1069 = vsel %vm258, %v1064, 0
    %v1071 = vsel %vm258, %v1066, 0
    %1073 = vmatpush.xpose.msra.mxu0 0.0
    %1074 = vmatpush.xpose.msra.mxu0 0.0
    %1075 = vmatpush.xpose.msra.mxu0 0.0
    %1076 = vmatpush.xpose.msra.mxu0 0.0
    %1077 = vmatpush.xpose.msra.mxu0 0.0
    %1078 = vmatpush.xpose.msra.mxu0 0.0
    %1079 = vmatpush.xpose.msra.mxu0 0.0
    %1080 = vmatpush.xpose.msra.mxu0 0.0
    %1081 = vmatpush.xpose.msra.mxu0 0.0
    %1082 = vmatpush.xpose.msra.mxu0 0.0
    %1083 = vmatpush.xpose.msra.mxu0 0.0
    %1084 = vmatpush.xpose.msra.mxu0 0.0
    %1085 = vmatpush.xpose.msra.mxu0 0.0
    %1086 = vmatpush.xpose.msra.mxu0 0.0
    %1087 = vmatpush.xpose.msra.mxu0 %v1071
    %1088 = vmatpush.xpose.msra.mxu0 %v1069
    %1089 = vmatmul.f32.gmra.mxu0 %v1067
    %v1090 = vpop.f32.mrf.mxu0
    %v1091 = vadd.f32 0.0, %v1090
    %1092 = vdwg.mxu0
    %1093 = vrot.lane.b32.xlu0 %v241, 64
    %v1094 = vpop.permute.xlu0 %1093
    %1095 = vrot.lane.b32.xlu0 %v145, 64
    %v1096 = vpop.permute.xlu0 %1095
    %1097 = vrot.lane.b32.xlu0 %v148, 64
    %v1098 = vpop.permute.xlu0 %1097
    %v1099 = vsel %vm258, %v1094, 0
    %v1101 = vsel %vm258, %v1096, 0
    %v1103 = vsel %vm258, %v1098, 0
    %1105 = vmatpush.xpose.msra.mxu0 0.0
    %1106 = vmatpush.xpose.msra.mxu0 0.0
    %1107 = vmatpush.xpose.msra.mxu0 0.0
    %1108 = vmatpush.xpose.msra.mxu0 0.0
    %1109 = vmatpush.xpose.msra.mxu0 0.0
    %1110 = vmatpush.xpose.msra.mxu0 0.0
    %1111 = vmatpush.xpose.msra.mxu0 0.0
    %1112 = vmatpush.xpose.msra.mxu0 0.0
    %1113 = vmatpush.xpose.msra.mxu0 0.0
    %1114 = vmatpush.xpose.msra.mxu0 0.0
    %1115 = vmatpush.xpose.msra.mxu0 0.0
    %1116 = vmatpush.xpose.msra.mxu0 0.0
    %1117 = vmatpush.xpose.msra.mxu0 0.0
    %1118 = vmatpush.xpose.msra.mxu0 0.0
    %1119 = vmatpush.xpose.msra.mxu0 %v1103
    %1120 = vmatpush.xpose.msra.mxu0 %v1101
    %1121 = vmatmul.f32.gmra.mxu0 %v1099
    %v1122 = vpop.f32.mrf.mxu0
    %v1123 = vadd.f32 0.0, %v1122
    %1124 = vdwg.mxu0
    %v1125 = vmul.f32 %v1091, 0.25
    %v1126 = vmul.f32 %v1123, 0.25
    %v1127 = vadd.f32 %v1125, %v37
    %v1128 = vadd.f32 %v1126, %v38
    %v1129 = vsel %vm258, %v1127, -inf
    %1130 = vmax.xlane.f32.xlu0 %v1129
    %v1131 = vpop.xlane.xlu0 %1130
    %v1132 = vsel %vm258, %v1128, -inf
    %1133 = vmax.xlane.f32.xlu0 %v1132
    %v1134 = vpop.xlane.xlu0 %1133
    %v1135 = vsub.f32 %v1127, %v1131
    %v1136 = vsub.f32 %v1128, %v1134
    %v1137 = vmul.f32 %v1135, 1.442695
    %v1138 = vpow.pop %v1137
    %v1139 = vmul.f32 %v1136, 1.442695
    %v1140 = vpow.pop %v1139
    %v1141 = vsel %vm258, %v1138, 0.0
    %1142 = vadd.xlane.f32.xlu0 %v1141
    %v1143 = vpop.xlane.xlu0 %1142
    %v1144 = vsel %vm258, %v1140, 0.0
    %1145 = vadd.xlane.f32.xlu0 %v1144
    %v1146 = vpop.xlane.xlu0 %1145
    %v1147 = vrcp.pop %v1143
    %v1148 = vmul.f32 %v1143, %v1147
    %v1149 = vsub.f32 1.0, %v1148
    %v1150 = vmul.f32 %v1147, %v1149
    %v1151 = vadd.f32 %v1147, %v1150
    %vm1152 = vweird.f32 %v1143
    %vm1153 = vweird.f32 %v1147
    %vm1154 = vmor %vm1152, %vm1153
    %v1155 = vsel %vm1154, %v1147, %v1151
    %v1156 = vand.u32 2147483647, %v1143
    %vm1157 = vcmp.eq.f32.partialorder %v1156, 8.507059e+37
    %v1158 = vand.u32 %v1143, 2147483648
    %v1159 = vor.u32 1.1754944e-38, %v1158
    %v1160 = vsel %vm1157, %v1159, %v1155
    %v1161 = vmul.f32 %v1138, %v1160
    %v1162 = vrcp.pop %v1146
    %v1163 = vmul.f32 %v1146, %v1162
    %v1164 = vsub.f32 1.0, %v1163
    %v1165 = vmul.f32 %v1162, %v1164
    %v1166 = vadd.f32 %v1162, %v1165
    %vm1167 = vweird.f32 %v1146
    %vm1168 = vweird.f32 %v1162
    %vm1169 = vmor %vm1167, %vm1168
    %v1170 = vsel %vm1169, %v1162, %v1166
    %v1171 = vand.u32 2147483647, %v1146
    %vm1172 = vcmp.eq.f32.partialorder %v1171, 8.507059e+37
    %v1173 = vand.u32 %v1146, 2147483648
    %v1174 = vor.u32 1.1754944e-38, %v1173
    %v1175 = vsel %vm1172, %v1174, %v1170
    %v1176 = vmul.f32 %v1140, %v1175
    %1177 = vrot.lane.b32.xlu0 %v184, 64
    %v1178 = vpop.permute.xlu0 %1177
    %1179 = vrot.lane.b32.xlu0 %v187, 64
    %v1180 = vpop.permute.xlu0 %1179
    %v1184 = vsel %vm258, %v1161, 0
    %1186 = vmatpush.msra.mxu0 0.0
    %1187 = vmatpush.msra.mxu0 0.0
    %1188 = vmatpush.msra.mxu0 0.0
    %1189 = vmatpush.msra.mxu0 0.0
    %1190 = vmatpush.msra.mxu0 0.0
    %1191 = vmatpush.msra.mxu0 0.0
    %1192 = vmatpush.msra.mxu0 0.0
    %1193 = vmatpush.msra.mxu0 0.0
    %1194 = vmatpush.msra.mxu0 0.0
    %1195 = vmatpush.msra.mxu0 0.0
    %1196 = vmatpush.msra.mxu0 0.0
    %1197 = vmatpush.msra.mxu0 0.0
    %1198 = vmatpush.msra.mxu0 0.0
    %1199 = vmatpush.msra.mxu0 0.0
    %1200 = vmatpush.msra.mxu0 %v1180
    %1201 = vmatpush.msra.mxu0 %v1178
    %1202 = vmatmul.f32.gmra.mxu0 %v1184
    %v1203 = vpop.f32.mrf.mxu0
    %v1204 = vadd.f32 0.0, %v1203
    %1205 = vdwg.mxu0
    %1206 = vrot.lane.b32.xlu0 %v190, 64
    %v1207 = vpop.permute.xlu0 %1206
    %1208 = vrot.lane.b32.xlu0 %v193, 64
    %v1209 = vpop.permute.xlu0 %1208
    %v1213 = vsel %vm258, %v1176, 0
    %1215 = vmatpush.msra.mxu0 0.0
    %1216 = vmatpush.msra.mxu0 0.0
    %1217 = vmatpush.msra.mxu0 0.0
    %1218 = vmatpush.msra.mxu0 0.0
    %1219 = vmatpush.msra.mxu0 0.0
    %1220 = vmatpush.msra.mxu0 0.0
    %1221 = vmatpush.msra.mxu0 0.0
    %1222 = vmatpush.msra.mxu0 0.0
    %1223 = vmatpush.msra.mxu0 0.0
    %1224 = vmatpush.msra.mxu0 0.0
    %1225 = vmatpush.msra.mxu0 0.0
    %1226 = vmatpush.msra.mxu0 0.0
    %1227 = vmatpush.msra.mxu0 0.0
    %1228 = vmatpush.msra.mxu0 0.0
    %1229 = vmatpush.msra.mxu0 %v1209
    %1230 = vmatpush.msra.mxu0 %v1207
    %1231 = vmatmul.f32.gmra.mxu0 %v1213
    %v1232 = vpop.f32.mrf.mxu0
    %v1233 = vadd.f32 0.0, %v1232
    %1234 = vdwg.mxu0
    %v1236 = vsel %vm258, %v1204, 0
    %v1239 = vsel %vm258, %v1233, 0
    %1241 = vmatpush.msra.mxu0 0.0
    %1242 = vmatpush.msra.mxu0 0.0
    %1243 = vmatpush.msra.mxu0 0.0
    %1244 = vmatpush.msra.mxu0 0.0
    %1245 = vmatpush.msra.mxu0 0.0
    %1246 = vmatpush.msra.mxu0 0.0
    %1247 = vmatpush.msra.mxu0 0.0
    %1248 = vmatpush.msra.mxu0 0.0
    %1249 = vmatpush.msra.mxu0 0.0
    %1250 = vmatpush.msra.mxu0 0.0
    %1251 = vmatpush.msra.mxu0 0.0
    %1252 = vmatpush.msra.mxu0 0.0
    %1253 = vmatpush.msra.mxu0 0.0
    %1254 = vmatpush.msra.mxu0 0.0
    %1255 = vmatpush.msra.mxu0 %v251
    %1256 = vmatpush.msra.mxu0 %v250
    %1257 = vmatmul.f32.gmra.mxu0 %v1236
    %v1258 = vpop.f32.mrf.mxu0
    %v1259 = vadd.f32 0.0, %v1258
    %1260 = vmatmul.f32.gmra.mxu0 %v1239
    %v1261 = vpop.f32.mrf.mxu0
    %v1262 = vadd.f32 0.0, %v1261
    %1263 = vdwg.mxu0
    %v1264 = vadd.f32 %v1059, %v1259
    %v1265 = vadd.f32 %v1060, %v1262
    %1266 = vrot.lane.b32.xlu0 %v240, 48
    %v1267 = vpop.permute.xlu0 %1266
    %1268 = vrot.lane.b32.xlu0 %v139, 48
    %v1269 = vpop.permute.xlu0 %1268
    %1270 = vrot.lane.b32.xlu0 %v142, 48
    %v1271 = vpop.permute.xlu0 %1270
    %v1272 = vsel %vm258, %v1267, 0
    %v1274 = vsel %vm258, %v1269, 0
    %v1276 = vsel %vm258, %v1271, 0
    %1278 = vmatpush.xpose.msra.mxu0 0.0
    %1279 = vmatpush.xpose.msra.mxu0 0.0
    %1280 = vmatpush.xpose.msra.mxu0 0.0
    %1281 = vmatpush.xpose.msra.mxu0 0.0
    %1282 = vmatpush.xpose.msra.mxu0 0.0
    %1283 = vmatpush.xpose.msra.mxu0 0.0
    %1284 = vmatpush.xpose.msra.mxu0 0.0
    %1285 = vmatpush.xpose.msra.mxu0 0.0
    %1286 = vmatpush.xpose.msra.mxu0 0.0
    %1287 = vmatpush.xpose.msra.mxu0 0.0
    %1288 = vmatpush.xpose.msra.mxu0 0.0
    %1289 = vmatpush.xpose.msra.mxu0 0.0
    %1290 = vmatpush.xpose.msra.mxu0 0.0
    %1291 = vmatpush.xpose.msra.mxu0 0.0
    %1292 = vmatpush.xpose.msra.mxu0 %v1276
    %1293 = vmatpush.xpose.msra.mxu0 %v1274
    %1294 = vmatmul.f32.gmra.mxu0 %v1272
    %v1295 = vpop.f32.mrf.mxu0
    %v1296 = vadd.f32 0.0, %v1295
    %1297 = vdwg.mxu0
    %1298 = vrot.lane.b32.xlu0 %v241, 48
    %v1299 = vpop.permute.xlu0 %1298
    %1300 = vrot.lane.b32.xlu0 %v145, 48
    %v1301 = vpop.permute.xlu0 %1300
    %1302 = vrot.lane.b32.xlu0 %v148, 48
    %v1303 = vpop.permute.xlu0 %1302
    %v1304 = vsel %vm258, %v1299, 0
    %v1306 = vsel %vm258, %v1301, 0
    %v1308 = vsel %vm258, %v1303, 0
    %1310 = vmatpush.xpose.msra.mxu0 0.0
    %1311 = vmatpush.xpose.msra.mxu0 0.0
    %1312 = vmatpush.xpose.msra.mxu0 0.0
    %1313 = vmatpush.xpose.msra.mxu0 0.0
    %1314 = vmatpush.xpose.msra.mxu0 0.0
    %1315 = vmatpush.xpose.msra.mxu0 0.0
    %1316 = vmatpush.xpose.msra.mxu0 0.0
    %1317 = vmatpush.xpose.msra.mxu0 0.0
    %1318 = vmatpush.xpose.msra.mxu0 0.0
    %1319 = vmatpush.xpose.msra.mxu0 0.0
    %1320 = vmatpush.xpose.msra.mxu0 0.0
    %1321 = vmatpush.xpose.msra.mxu0 0.0
    %1322 = vmatpush.xpose.msra.mxu0 0.0
    %1323 = vmatpush.xpose.msra.mxu0 0.0
    %1324 = vmatpush.xpose.msra.mxu0 %v1308
    %1325 = vmatpush.xpose.msra.mxu0 %v1306
    %1326 = vmatmul.f32.gmra.mxu0 %v1304
    %v1327 = vpop.f32.mrf.mxu0
    %v1328 = vadd.f32 0.0, %v1327
    %1329 = vdwg.mxu0
    %v1330 = vmul.f32 %v1296, 0.25
    %v1331 = vmul.f32 %v1328, 0.25
    %v1332 = vadd.f32 %v1330, %v37
    %v1333 = vadd.f32 %v1331, %v38
    %v1334 = vsel %vm258, %v1332, -inf
    %1335 = vmax.xlane.f32.xlu0 %v1334
    %v1336 = vpop.xlane.xlu0 %1335
    %v1337 = vsel %vm258, %v1333, -inf
    %1338 = vmax.xlane.f32.xlu0 %v1337
    %v1339 = vpop.xlane.xlu0 %1338
    %v1340 = vsub.f32 %v1332, %v1336
    %v1341 = vsub.f32 %v1333, %v1339
    %v1342 = vmul.f32 %v1340, 1.442695
    %v1343 = vpow.pop %v1342
    %v1344 = vmul.f32 %v1341, 1.442695
    %v1345 = vpow.pop %v1344
    %v1346 = vsel %vm258, %v1343, 0.0
    %1347 = vadd.xlane.f32.xlu0 %v1346
    %v1348 = vpop.xlane.xlu0 %1347
    %v1349 = vsel %vm258, %v1345, 0.0
    %1350 = vadd.xlane.f32.xlu0 %v1349
    %v1351 = vpop.xlane.xlu0 %1350
    %v1352 = vrcp.pop %v1348
    %v1353 = vmul.f32 %v1348, %v1352
    %v1354 = vsub.f32 1.0, %v1353
    %v1355 = vmul.f32 %v1352, %v1354
    %v1356 = vadd.f32 %v1352, %v1355
    %vm1357 = vweird.f32 %v1348
    %vm1358 = vweird.f32 %v1352
    %vm1359 = vmor %vm1357, %vm1358
    %v1360 = vsel %vm1359, %v1352, %v1356
    %v1361 = vand.u32 2147483647, %v1348
    %vm1362 = vcmp.eq.f32.partialorder %v1361, 8.507059e+37
    %v1363 = vand.u32 %v1348, 2147483648
    %v1364 = vor.u32 1.1754944e-38, %v1363
    %v1365 = vsel %vm1362, %v1364, %v1360
    %v1366 = vmul.f32 %v1343, %v1365
    %v1367 = vrcp.pop %v1351
    %v1368 = vmul.f32 %v1351, %v1367
    %v1369 = vsub.f32 1.0, %v1368
    %v1370 = vmul.f32 %v1367, %v1369
    %v1371 = vadd.f32 %v1367, %v1370
    %vm1372 = vweird.f32 %v1351
    %vm1373 = vweird.f32 %v1367
    %vm1374 = vmor %vm1372, %vm1373
    %v1375 = vsel %vm1374, %v1367, %v1371
    %v1376 = vand.u32 2147483647, %v1351
    %vm1377 = vcmp.eq.f32.partialorder %v1376, 8.507059e+37
    %v1378 = vand.u32 %v1351, 2147483648
    %v1379 = vor.u32 1.1754944e-38, %v1378
    %v1380 = vsel %vm1377, %v1379, %v1375
    %v1381 = vmul.f32 %v1345, %v1380
    %1382 = vrot.lane.b32.xlu0 %v184, 48
    %v1383 = vpop.permute.xlu0 %1382
    %1384 = vrot.lane.b32.xlu0 %v187, 48
    %v1385 = vpop.permute.xlu0 %1384
    %v1389 = vsel %vm258, %v1366, 0
    %1391 = vmatpush.msra.mxu0 0.0
    %1392 = vmatpush.msra.mxu0 0.0
    %1393 = vmatpush.msra.mxu0 0.0
    %1394 = vmatpush.msra.mxu0 0.0
    %1395 = vmatpush.msra.mxu0 0.0
    %1396 = vmatpush.msra.mxu0 0.0
    %1397 = vmatpush.msra.mxu0 0.0
    %1398 = vmatpush.msra.mxu0 0.0
    %1399 = vmatpush.msra.mxu0 0.0
    %1400 = vmatpush.msra.mxu0 0.0
    %1401 = vmatpush.msra.mxu0 0.0
    %1402 = vmatpush.msra.mxu0 0.0
    %1403 = vmatpush.msra.mxu0 0.0
    %1404 = vmatpush.msra.mxu0 0.0
    %1405 = vmatpush.msra.mxu0 %v1385
    %1406 = vmatpush.msra.mxu0 %v1383
    %1407 = vmatmul.f32.gmra.mxu0 %v1389
    %v1408 = vpop.f32.mrf.mxu0
    %v1409 = vadd.f32 0.0, %v1408
    %1410 = vdwg.mxu0
    %1411 = vrot.lane.b32.xlu0 %v190, 48
    %v1412 = vpop.permute.xlu0 %1411
    %1413 = vrot.lane.b32.xlu0 %v193, 48
    %v1414 = vpop.permute.xlu0 %1413
    %v1418 = vsel %vm258, %v1381, 0
    %1420 = vmatpush.msra.mxu0 0.0
    %1421 = vmatpush.msra.mxu0 0.0
    %1422 = vmatpush.msra.mxu0 0.0
    %1423 = vmatpush.msra.mxu0 0.0
    %1424 = vmatpush.msra.mxu0 0.0
    %1425 = vmatpush.msra.mxu0 0.0
    %1426 = vmatpush.msra.mxu0 0.0
    %1427 = vmatpush.msra.mxu0 0.0
    %1428 = vmatpush.msra.mxu0 0.0
    %1429 = vmatpush.msra.mxu0 0.0
    %1430 = vmatpush.msra.mxu0 0.0
    %1431 = vmatpush.msra.mxu0 0.0
    %1432 = vmatpush.msra.mxu0 0.0
    %1433 = vmatpush.msra.mxu0 0.0
    %1434 = vmatpush.msra.mxu0 %v1414
    %1435 = vmatpush.msra.mxu0 %v1412
    %1436 = vmatmul.f32.gmra.mxu0 %v1418
    %v1437 = vpop.f32.mrf.mxu0
    %v1438 = vadd.f32 0.0, %v1437
    %1439 = vdwg.mxu0
    %v1441 = vsel %vm258, %v1409, 0
    %v1444 = vsel %vm258, %v1438, 0
    %1446 = vmatpush.msra.mxu0 0.0
    %1447 = vmatpush.msra.mxu0 0.0
    %1448 = vmatpush.msra.mxu0 0.0
    %1449 = vmatpush.msra.mxu0 0.0
    %1450 = vmatpush.msra.mxu0 0.0
    %1451 = vmatpush.msra.mxu0 0.0
    %1452 = vmatpush.msra.mxu0 0.0
    %1453 = vmatpush.msra.mxu0 0.0
    %1454 = vmatpush.msra.mxu0 0.0
    %1455 = vmatpush.msra.mxu0 0.0
    %1456 = vmatpush.msra.mxu0 0.0
    %1457 = vmatpush.msra.mxu0 0.0
    %1458 = vmatpush.msra.mxu0 0.0
    %1459 = vmatpush.msra.mxu0 0.0
    %1460 = vmatpush.msra.mxu0 %v253
    %1461 = vmatpush.msra.mxu0 %v252
    %1462 = vmatmul.f32.gmra.mxu0 %v1441
    %v1463 = vpop.f32.mrf.mxu0
    %v1464 = vadd.f32 0.0, %v1463
    %1465 = vmatmul.f32.gmra.mxu0 %v1444
    %v1466 = vpop.f32.mrf.mxu0
    %v1467 = vadd.f32 0.0, %v1466
    %1468 = vdwg.mxu0
    %v1469 = vadd.f32 %v1264, %v1464
    %v1470 = vadd.f32 %v1265, %v1467
    %1471 = vrot.lane.b32.xlu0 %v240, 32
    %v1472 = vpop.permute.xlu0 %1471
    %1473 = vrot.lane.b32.xlu0 %v139, 32
    %v1474 = vpop.permute.xlu0 %1473
    %1475 = vrot.lane.b32.xlu0 %v142, 32
    %v1476 = vpop.permute.xlu0 %1475
    %v1477 = vsel %vm258, %v1472, 0
    %v1479 = vsel %vm258, %v1474, 0
    %v1481 = vsel %vm258, %v1476, 0
    %1483 = vmatpush.xpose.msra.mxu0 0.0
    %1484 = vmatpush.xpose.msra.mxu0 0.0
    %1485 = vmatpush.xpose.msra.mxu0 0.0
    %1486 = vmatpush.xpose.msra.mxu0 0.0
    %1487 = vmatpush.xpose.msra.mxu0 0.0
    %1488 = vmatpush.xpose.msra.mxu0 0.0
    %1489 = vmatpush.xpose.msra.mxu0 0.0
    %1490 = vmatpush.xpose.msra.mxu0 0.0
    %1491 = vmatpush.xpose.msra.mxu0 0.0
    %1492 = vmatpush.xpose.msra.mxu0 0.0
    %1493 = vmatpush.xpose.msra.mxu0 0.0
    %1494 = vmatpush.xpose.msra.mxu0 0.0
    %1495 = vmatpush.xpose.msra.mxu0 0.0
    %1496 = vmatpush.xpose.msra.mxu0 0.0
    %1497 = vmatpush.xpose.msra.mxu0 %v1481
    %1498 = vmatpush.xpose.msra.mxu0 %v1479
    %1499 = vmatmul.f32.gmra.mxu0 %v1477
    %v1500 = vpop.f32.mrf.mxu0
    %v1501 = vadd.f32 0.0, %v1500
    %1502 = vdwg.mxu0
    %1503 = vrot.lane.b32.xlu0 %v241, 32
    %v1504 = vpop.permute.xlu0 %1503
    %1505 = vrot.lane.b32.xlu0 %v145, 32
    %v1506 = vpop.permute.xlu0 %1505
    %1507 = vrot.lane.b32.xlu0 %v148, 32
    %v1508 = vpop.permute.xlu0 %1507
    %v1509 = vsel %vm258, %v1504, 0
    %v1511 = vsel %vm258, %v1506, 0
    %v1513 = vsel %vm258, %v1508, 0
    %1515 = vmatpush.xpose.msra.mxu0 0.0
    %1516 = vmatpush.xpose.msra.mxu0 0.0
    %1517 = vmatpush.xpose.msra.mxu0 0.0
    %1518 = vmatpush.xpose.msra.mxu0 0.0
    %1519 = vmatpush.xpose.msra.mxu0 0.0
    %1520 = vmatpush.xpose.msra.mxu0 0.0
    %1521 = vmatpush.xpose.msra.mxu0 0.0
    %1522 = vmatpush.xpose.msra.mxu0 0.0
    %1523 = vmatpush.xpose.msra.mxu0 0.0
    %1524 = vmatpush.xpose.msra.mxu0 0.0
    %1525 = vmatpush.xpose.msra.mxu0 0.0
    %1526 = vmatpush.xpose.msra.mxu0 0.0
    %1527 = vmatpush.xpose.msra.mxu0 0.0
    %1528 = vmatpush.xpose.msra.mxu0 0.0
    %1529 = vmatpush.xpose.msra.mxu0 %v1513
    %1530 = vmatpush.xpose.msra.mxu0 %v1511
    %1531 = vmatmul.f32.gmra.mxu0 %v1509
    %v1532 = vpop.f32.mrf.mxu0
    %v1533 = vadd.f32 0.0, %v1532
    %1534 = vdwg.mxu0
    %v1535 = vmul.f32 %v1501, 0.25
    %v1536 = vmul.f32 %v1533, 0.25
    %v1537 = vadd.f32 %v1535, %v37
    %v1538 = vadd.f32 %v1536, %v38
    %v1539 = vsel %vm258, %v1537, -inf
    %1540 = vmax.xlane.f32.xlu0 %v1539
    %v1541 = vpop.xlane.xlu0 %1540
    %v1542 = vsel %vm258, %v1538, -inf
    %1543 = vmax.xlane.f32.xlu0 %v1542
    %v1544 = vpop.xlane.xlu0 %1543
    %v1545 = vsub.f32 %v1537, %v1541
    %v1546 = vsub.f32 %v1538, %v1544
    %v1547 = vmul.f32 %v1545, 1.442695
    %v1548 = vpow.pop %v1547
    %v1549 = vmul.f32 %v1546, 1.442695
    %v1550 = vpow.pop %v1549
    %v1551 = vsel %vm258, %v1548, 0.0
    %1552 = vadd.xlane.f32.xlu0 %v1551
    %v1553 = vpop.xlane.xlu0 %1552
    %v1554 = vsel %vm258, %v1550, 0.0
    %1555 = vadd.xlane.f32.xlu0 %v1554
    %v1556 = vpop.xlane.xlu0 %1555
    %v1557 = vrcp.pop %v1553
    %v1558 = vmul.f32 %v1553, %v1557
    %v1559 = vsub.f32 1.0, %v1558
    %v1560 = vmul.f32 %v1557, %v1559
    %v1561 = vadd.f32 %v1557, %v1560
    %vm1562 = vweird.f32 %v1553
    %vm1563 = vweird.f32 %v1557
    %vm1564 = vmor %vm1562, %vm1563
    %v1565 = vsel %vm1564, %v1557, %v1561
    %v1566 = vand.u32 2147483647, %v1553
    %vm1567 = vcmp.eq.f32.partialorder %v1566, 8.507059e+37
    %v1568 = vand.u32 %v1553, 2147483648
    %v1569 = vor.u32 1.1754944e-38, %v1568
    %v1570 = vsel %vm1567, %v1569, %v1565
    %v1571 = vmul.f32 %v1548, %v1570
    %v1572 = vrcp.pop %v1556
    %v1573 = vmul.f32 %v1556, %v1572
    %v1574 = vsub.f32 1.0, %v1573
    %v1575 = vmul.f32 %v1572, %v1574
    %v1576 = vadd.f32 %v1572, %v1575
    %vm1577 = vweird.f32 %v1556
    %vm1578 = vweird.f32 %v1572
    %vm1579 = vmor %vm1577, %vm1578
    %v1580 = vsel %vm1579, %v1572, %v1576
    %v1581 = vand.u32 2147483647, %v1556
    %vm1582 = vcmp.eq.f32.partialorder %v1581, 8.507059e+37
    %v1583 = vand.u32 %v1556, 2147483648
    %v1584 = vor.u32 1.1754944e-38, %v1583
    %v1585 = vsel %vm1582, %v1584, %v1580
    %v1586 = vmul.f32 %v1550, %v1585
    %1587 = vrot.lane.b32.xlu0 %v184, 32
    %v1588 = vpop.permute.xlu0 %1587
    %1589 = vrot.lane.b32.xlu0 %v187, 32
    %v1590 = vpop.permute.xlu0 %1589
    %v1594 = vsel %vm258, %v1571, 0
    %1596 = vmatpush.msra.mxu0 0.0
    %1597 = vmatpush.msra.mxu0 0.0
    %1598 = vmatpush.msra.mxu0 0.0
    %1599 = vmatpush.msra.mxu0 0.0
    %1600 = vmatpush.msra.mxu0 0.0
    %1601 = vmatpush.msra.mxu0 0.0
    %1602 = vmatpush.msra.mxu0 0.0
    %1603 = vmatpush.msra.mxu0 0.0
    %1604 = vmatpush.msra.mxu0 0.0
    %1605 = vmatpush.msra.mxu0 0.0
    %1606 = vmatpush.msra.mxu0 0.0
    %1607 = vmatpush.msra.mxu0 0.0
    %1608 = vmatpush.msra.mxu0 0.0
    %1609 = vmatpush.msra.mxu0 0.0
    %1610 = vmatpush.msra.mxu0 %v1590
    %1611 = vmatpush.msra.mxu0 %v1588
    %1612 = vmatmul.f32.gmra.mxu0 %v1594
    %v1613 = vpop.f32.mrf.mxu0
    %v1614 = vadd.f32 0.0, %v1613
    %1615 = vdwg.mxu0
    %1616 = vrot.lane.b32.xlu0 %v190, 32
    %v1617 = vpop.permute.xlu0 %1616
    %1618 = vrot.lane.b32.xlu0 %v193, 32
    %v1619 = vpop.permute.xlu0 %1618
    %v1623 = vsel %vm258, %v1586, 0
    %1625 = vmatpush.msra.mxu0 0.0
    %1626 = vmatpush.msra.mxu0 0.0
    %1627 = vmatpush.msra.mxu0 0.0
    %1628 = vmatpush.msra.mxu0 0.0
    %1629 = vmatpush.msra.mxu0 0.0
    %1630 = vmatpush.msra.mxu0 0.0
    %1631 = vmatpush.msra.mxu0 0.0
    %1632 = vmatpush.msra.mxu0 0.0
    %1633 = vmatpush.msra.mxu0 0.0
    %1634 = vmatpush.msra.mxu0 0.0
    %1635 = vmatpush.msra.mxu0 0.0
    %1636 = vmatpush.msra.mxu0 0.0
    %1637 = vmatpush.msra.mxu0 0.0
    %1638 = vmatpush.msra.mxu0 0.0
    %1639 = vmatpush.msra.mxu0 %v1619
    %1640 = vmatpush.msra.mxu0 %v1617
    %1641 = vmatmul.f32.gmra.mxu0 %v1623
    %v1642 = vpop.f32.mrf.mxu0
    %v1643 = vadd.f32 0.0, %v1642
    %1644 = vdwg.mxu0
    %v1646 = vsel %vm258, %v1614, 0
    %v1649 = vsel %vm258, %v1643, 0
    %1651 = vmatpush.msra.mxu0 0.0
    %1652 = vmatpush.msra.mxu0 0.0
    %1653 = vmatpush.msra.mxu0 0.0
    %1654 = vmatpush.msra.mxu0 0.0
    %1655 = vmatpush.msra.mxu0 0.0
    %1656 = vmatpush.msra.mxu0 0.0
    %1657 = vmatpush.msra.mxu0 0.0
    %1658 = vmatpush.msra.mxu0 0.0
    %1659 = vmatpush.msra.mxu0 0.0
    %1660 = vmatpush.msra.mxu0 0.0
    %1661 = vmatpush.msra.mxu0 0.0
    %1662 = vmatpush.msra.mxu0 0.0
    %1663 = vmatpush.msra.mxu0 0.0
    %1664 = vmatpush.msra.mxu0 0.0
    %1665 = vmatpush.msra.mxu0 %v255
    %1666 = vmatpush.msra.mxu0 %v254
    %1667 = vmatmul.f32.gmra.mxu0 %v1646
    %v1668 = vpop.f32.mrf.mxu0
    %v1669 = vadd.f32 0.0, %v1668
    %1670 = vmatmul.f32.gmra.mxu0 %v1649
    %v1671 = vpop.f32.mrf.mxu0
    %v1672 = vadd.f32 0.0, %v1671
    %1673 = vdwg.mxu0
    %v1674 = vadd.f32 %v1469, %v1669
    %v1675 = vadd.f32 %v1470, %v1672
    %1676 = vrot.lane.b32.xlu0 %v240, 16
    %v1677 = vpop.permute.xlu0 %1676
    %1678 = vrot.lane.b32.xlu0 %v139, 16
    %v1679 = vpop.permute.xlu0 %1678
    %1680 = vrot.lane.b32.xlu0 %v142, 16
    %v1681 = vpop.permute.xlu0 %1680
    %v1682 = vsel %vm258, %v1677, 0
    %v1684 = vsel %vm258, %v1679, 0
    %v1686 = vsel %vm258, %v1681, 0
    %1688 = vmatpush.xpose.msra.mxu0 0.0
    %1689 = vmatpush.xpose.msra.mxu0 0.0
    %1690 = vmatpush.xpose.msra.mxu0 0.0
    %1691 = vmatpush.xpose.msra.mxu0 0.0
    %1692 = vmatpush.xpose.msra.mxu0 0.0
    %1693 = vmatpush.xpose.msra.mxu0 0.0
    %1694 = vmatpush.xpose.msra.mxu0 0.0
    %1695 = vmatpush.xpose.msra.mxu0 0.0
    %1696 = vmatpush.xpose.msra.mxu0 0.0
    %1697 = vmatpush.xpose.msra.mxu0 0.0
    %1698 = vmatpush.xpose.msra.mxu0 0.0
    %1699 = vmatpush.xpose.msra.mxu0 0.0
    %1700 = vmatpush.xpose.msra.mxu0 0.0
    %1701 = vmatpush.xpose.msra.mxu0 0.0
    %1702 = vmatpush.xpose.msra.mxu0 %v1686
    %1703 = vmatpush.xpose.msra.mxu0 %v1684
    %1704 = vmatmul.f32.gmra.mxu0 %v1682
    %v1705 = vpop.f32.mrf.mxu0
    %v1706 = vadd.f32 0.0, %v1705
    %1707 = vdwg.mxu0
    %1708 = vrot.lane.b32.xlu0 %v241, 16
    %v1709 = vpop.permute.xlu0 %1708
    %1710 = vrot.lane.b32.xlu0 %v145, 16
    %v1711 = vpop.permute.xlu0 %1710
    %1712 = vrot.lane.b32.xlu0 %v148, 16
    %v1713 = vpop.permute.xlu0 %1712
    %v1714 = vsel %vm258, %v1709, 0
    %v1716 = vsel %vm258, %v1711, 0
    %v1718 = vsel %vm258, %v1713, 0
    %1720 = vmatpush.xpose.msra.mxu0 0.0
    %1721 = vmatpush.xpose.msra.mxu0 0.0
    %1722 = vmatpush.xpose.msra.mxu0 0.0
    %1723 = vmatpush.xpose.msra.mxu0 0.0
    %1724 = vmatpush.xpose.msra.mxu0 0.0
    %1725 = vmatpush.xpose.msra.mxu0 0.0
    %1726 = vmatpush.xpose.msra.mxu0 0.0
    %1727 = vmatpush.xpose.msra.mxu0 0.0
    %1728 = vmatpush.xpose.msra.mxu0 0.0
    %1729 = vmatpush.xpose.msra.mxu0 0.0
    %1730 = vmatpush.xpose.msra.mxu0 0.0
    %1731 = vmatpush.xpose.msra.mxu0 0.0
    %1732 = vmatpush.xpose.msra.mxu0 0.0
    %1733 = vmatpush.xpose.msra.mxu0 0.0
    %1734 = vmatpush.xpose.msra.mxu0 %v1718
    %1735 = vmatpush.xpose.msra.mxu0 %v1716
    %1736 = vmatmul.f32.gmra.mxu0 %v1714
    %v1737 = vpop.f32.mrf.mxu0
    %v1738 = vadd.f32 0.0, %v1737
    %1739 = vdwg.mxu0
    %v1740 = vmul.f32 %v1706, 0.25
    %v1741 = vmul.f32 %v1738, 0.25
    %v1742 = vadd.f32 %v1740, %v37
    %v1743 = vadd.f32 %v1741, %v38
    %v1744 = vsel %vm258, %v1742, -inf
    %1745 = vmax.xlane.f32.xlu0 %v1744
    %v1746 = vpop.xlane.xlu0 %1745
    %v1747 = vsel %vm258, %v1743, -inf
    %1748 = vmax.xlane.f32.xlu0 %v1747
    %v1749 = vpop.xlane.xlu0 %1748
    %v1750 = vsub.f32 %v1742, %v1746
    %v1751 = vsub.f32 %v1743, %v1749
    %v1752 = vmul.f32 %v1750, 1.442695
    %v1753 = vpow.pop %v1752
    %v1754 = vmul.f32 %v1751, 1.442695
    %v1755 = vpow.pop %v1754
    %v1756 = vsel %vm258, %v1753, 0.0
    %1757 = vadd.xlane.f32.xlu0 %v1756
    %v1758 = vpop.xlane.xlu0 %1757
    %v1759 = vsel %vm258, %v1755, 0.0
    %1760 = vadd.xlane.f32.xlu0 %v1759
    %v1761 = vpop.xlane.xlu0 %1760
    %v1762 = vrcp.pop %v1758
    %v1763 = vmul.f32 %v1758, %v1762
    %v1764 = vsub.f32 1.0, %v1763
    %v1765 = vmul.f32 %v1762, %v1764
    %v1766 = vadd.f32 %v1762, %v1765
    %vm1767 = vweird.f32 %v1758
    %vm1768 = vweird.f32 %v1762
    %vm1769 = vmor %vm1767, %vm1768
    %v1770 = vsel %vm1769, %v1762, %v1766
    %v1771 = vand.u32 2147483647, %v1758
    %vm1772 = vcmp.eq.f32.partialorder %v1771, 8.507059e+37
    %v1773 = vand.u32 %v1758, 2147483648
    %v1774 = vor.u32 1.1754944e-38, %v1773
    %v1775 = vsel %vm1772, %v1774, %v1770
    %v1776 = vmul.f32 %v1753, %v1775
    %v1777 = vrcp.pop %v1761
    %v1778 = vmul.f32 %v1761, %v1777
    %v1779 = vsub.f32 1.0, %v1778
    %v1780 = vmul.f32 %v1777, %v1779
    %v1781 = vadd.f32 %v1777, %v1780
    %vm1782 = vweird.f32 %v1761
    %vm1783 = vweird.f32 %v1777
    %vm1784 = vmor %vm1782, %vm1783
    %v1785 = vsel %vm1784, %v1777, %v1781
    %v1786 = vand.u32 2147483647, %v1761
    %vm1787 = vcmp.eq.f32.partialorder %v1786, 8.507059e+37
    %v1788 = vand.u32 %v1761, 2147483648
    %v1789 = vor.u32 1.1754944e-38, %v1788
    %v1790 = vsel %vm1787, %v1789, %v1785
    %v1791 = vmul.f32 %v1755, %v1790
    %1792 = vrot.lane.b32.xlu0 %v184, 16
    %v1793 = vpop.permute.xlu0 %1792
    %1794 = vrot.lane.b32.xlu0 %v187, 16
    %v1795 = vpop.permute.xlu0 %1794
    %v1799 = vsel %vm258, %v1776, 0
    %1801 = vmatpush.msra.mxu0 0.0
    %1802 = vmatpush.msra.mxu0 0.0
    %1803 = vmatpush.msra.mxu0 0.0
    %1804 = vmatpush.msra.mxu0 0.0
    %1805 = vmatpush.msra.mxu0 0.0
    %1806 = vmatpush.msra.mxu0 0.0
    %1807 = vmatpush.msra.mxu0 0.0
    %1808 = vmatpush.msra.mxu0 0.0
    %1809 = vmatpush.msra.mxu0 0.0
    %1810 = vmatpush.msra.mxu0 0.0
    %1811 = vmatpush.msra.mxu0 0.0
    %1812 = vmatpush.msra.mxu0 0.0
    %1813 = vmatpush.msra.mxu0 0.0
    %1814 = vmatpush.msra.mxu0 0.0
    %1815 = vmatpush.msra.mxu0 %v1795
    %1816 = vmatpush.msra.mxu0 %v1793
    %1817 = vmatmul.f32.gmra.mxu0 %v1799
    %v1818 = vpop.f32.mrf.mxu0
    %v1819 = vadd.f32 0.0, %v1818
    %1820 = vdwg.mxu0
    %1821 = vrot.lane.b32.xlu0 %v190, 16
    %v1822 = vpop.permute.xlu0 %1821
    %1823 = vrot.lane.b32.xlu0 %v193, 16
    %v1824 = vpop.permute.xlu0 %1823
    %v1828 = vsel %vm258, %v1791, 0
    %1830 = vmatpush.msra.mxu0 0.0
    %1831 = vmatpush.msra.mxu0 0.0
    %1832 = vmatpush.msra.mxu0 0.0
    %1833 = vmatpush.msra.mxu0 0.0
    %1834 = vmatpush.msra.mxu0 0.0
    %1835 = vmatpush.msra.mxu0 0.0
    %1836 = vmatpush.msra.mxu0 0.0
    %1837 = vmatpush.msra.mxu0 0.0
    %1838 = vmatpush.msra.mxu0 0.0
    %1839 = vmatpush.msra.mxu0 0.0
    %1840 = vmatpush.msra.mxu0 0.0
    %1841 = vmatpush.msra.mxu0 0.0
    %1842 = vmatpush.msra.mxu0 0.0
    %1843 = vmatpush.msra.mxu0 0.0
    %1844 = vmatpush.msra.mxu0 %v1824
    %1845 = vmatpush.msra.mxu0 %v1822
    %1846 = vmatmul.f32.gmra.mxu0 %v1828
    %v1847 = vpop.f32.mrf.mxu0
    %v1848 = vadd.f32 0.0, %v1847
    %1849 = vdwg.mxu0
    %v1851 = vsel %vm258, %v1819, 0
    %v1854 = vsel %vm258, %v1848, 0
    %1856 = vmatpush.msra.mxu0 0.0
    %1857 = vmatpush.msra.mxu0 0.0
    %1858 = vmatpush.msra.mxu0 0.0
    %1859 = vmatpush.msra.mxu0 0.0
    %1860 = vmatpush.msra.mxu0 0.0
    %1861 = vmatpush.msra.mxu0 0.0
    %1862 = vmatpush.msra.mxu0 0.0
    %1863 = vmatpush.msra.mxu0 0.0
    %1864 = vmatpush.msra.mxu0 0.0
    %1865 = vmatpush.msra.mxu0 0.0
    %1866 = vmatpush.msra.mxu0 0.0
    %1867 = vmatpush.msra.mxu0 0.0
    %1868 = vmatpush.msra.mxu0 0.0
    %1869 = vmatpush.msra.mxu0 0.0
    %1870 = vmatpush.msra.mxu0 %v257
    %1871 = vmatpush.msra.mxu0 %v256
    %1872 = vmatmul.f32.gmra.mxu0 %v1851
    %v1873 = vpop.f32.mrf.mxu0
    %v1874 = vadd.f32 0.0, %v1873
    %1875 = vmatmul.f32.gmra.mxu0 %v1854
    %v1876 = vpop.f32.mrf.mxu0
    %v1877 = vadd.f32 0.0, %v1876
    %1878 = vdwg.mxu0
    %v1879 = vadd.f32 %v1674, %v1874
    %v1880 = vadd.f32 %v1675, %v1877
    %v1881 = vld [vmem:[%s8] sm:$0x1]
    %v1883 = vperm.slane %v1881, 0
    %v1885 = vadd.f32 %v1879, %v1883
    %v1886 = vadd.f32 %v1880, %v1883
    %1887 = vmatpush.xpose.msra.mxu0 0.0
    %1888 = vmatpush.xpose.msra.mxu0 0.0
    %1889 = vmatpush.xpose.msra.mxu0 0.0
    %1890 = vmatpush.xpose.msra.mxu0 0.0
    %1891 = vmatpush.xpose.msra.mxu0 0.0
    %1892 = vmatpush.xpose.msra.mxu0 0.0
    %1893 = vmatpush.xpose.msra.mxu0 0.0
    %1894 = vmatpush.xpose.msra.mxu0 0.0
    %1895 = vmatpush.xpose.msra.mxu0 0.0
    %1896 = vmatpush.xpose.msra.mxu0 0.0
    %1897 = vmatpush.xpose.msra.mxu0 0.0
    %1898 = vmatpush.xpose.msra.mxu0 0.0
    %1899 = vmatpush.xpose.msra.mxu0 0.0
    %1900 = vmatpush.xpose.msra.mxu0 0.0
    %1901 = vmatpush.xpose.msra.mxu0 %v34
    %1902 = vmatpush.xpose.msra.mxu0 %v33
    %1903 = vmatmul.f32.gmra.mxu0 %v1885
    %v1904 = vpop.f32.mrf.mxu0
    %v1905 = vadd.f32 0.0, %v1904
    %1906 = vdwg.mxu0
    %1907 = vmatpush.xpose.msra.mxu0 0.0
    %1908 = vmatpush.xpose.msra.mxu0 0.0
    %1909 = vmatpush.xpose.msra.mxu0 0.0
    %1910 = vmatpush.xpose.msra.mxu0 0.0
    %1911 = vmatpush.xpose.msra.mxu0 0.0
    %1912 = vmatpush.xpose.msra.mxu0 0.0
    %1913 = vmatpush.xpose.msra.mxu0 0.0
    %1914 = vmatpush.xpose.msra.mxu0 0.0
    %1915 = vmatpush.xpose.msra.mxu0 0.0
    %1916 = vmatpush.xpose.msra.mxu0 0.0
    %1917 = vmatpush.xpose.msra.mxu0 0.0
    %1918 = vmatpush.xpose.msra.mxu0 0.0
    %1919 = vmatpush.xpose.msra.mxu0 0.0
    %1920 = vmatpush.xpose.msra.mxu0 0.0
    %1921 = vmatpush.xpose.msra.mxu0 %v36
    %1922 = vmatpush.xpose.msra.mxu0 %v35
    %1923 = vmatmul.f32.gmra.mxu0 %v1886
    %v1924 = vpop.f32.mrf.mxu0
    %v1925 = vadd.f32 0.0, %v1924
    %1926 = vdwg.mxu0
    %v1927 = vtanh.pop %v1905
    %v1928 = vtanh.pop %v1925
    %v1929 = vmul.f32 %v1927, 10.0
    %v1930 = vmul.f32 %v1928, 10.0
    %v1931 = vadd.f32 %v1929, %v37
    %v1932 = vadd.f32 %v1930, %v38
    %v1933 = vsel %vm258, %v1931, -inf
    %1934 = vmax.xlane.f32.xlu0 %v1933
    %v1935 = vpop.xlane.xlu0 %1934
    %v1936 = vsel %vm258, %v1932, -inf
    %1937 = vmax.xlane.f32.xlu0 %v1936
    %v1938 = vpop.xlane.xlu0 %1937
    %v1939 = vsub.f32 %v1931, %v1935
    %v1940 = vsub.f32 %v1932, %v1938
    %v1941 = vmul.f32 %v1939, 1.442695
    %v1942 = vpow.pop %v1941
    %v1943 = vmul.f32 %v1940, 1.442695
    %v1944 = vpow.pop %v1943
    %v1945 = vsel %vm258, %v1942, 0.0
    %1946 = vadd.xlane.f32.xlu0 %v1945
    %v1947 = vpop.xlane.xlu0 %1946
    %v1948 = vsel %vm258, %v1944, 0.0
    %1949 = vadd.xlane.f32.xlu0 %v1948
    %v1950 = vpop.xlane.xlu0 %1949
    %v1951 = vrcp.pop %v1947
    %v1952 = vmul.f32 %v1947, %v1951
    %v1953 = vsub.f32 1.0, %v1952
    %v1954 = vmul.f32 %v1951, %v1953
    %v1955 = vadd.f32 %v1951, %v1954
    %vm1956 = vweird.f32 %v1947
    %vm1957 = vweird.f32 %v1951
    %vm1958 = vmor %vm1956, %vm1957
    %v1959 = vsel %vm1958, %v1951, %v1955
    %v1960 = vand.u32 2147483647, %v1947
    %vm1961 = vcmp.eq.f32.partialorder %v1960, 8.507059e+37
    %v1962 = vand.u32 %v1947, 2147483648
    %v1963 = vor.u32 1.1754944e-38, %v1962
    %v1964 = vsel %vm1961, %v1963, %v1959
    %v1965 = vmul.f32 %v1942, %v1964
    %v1966 = vrcp.pop %v1950
    %v1967 = vmul.f32 %v1950, %v1966
    %v1968 = vsub.f32 1.0, %v1967
    %v1969 = vmul.f32 %v1966, %v1968
    %v1970 = vadd.f32 %v1966, %v1969
    %vm1971 = vweird.f32 %v1950
    %vm1972 = vweird.f32 %v1966
    %vm1973 = vmor %vm1971, %vm1972
    %v1974 = vsel %vm1973, %v1966, %v1970
    %v1975 = vand.u32 2147483647, %v1950
    %vm1976 = vcmp.eq.f32.partialorder %v1975, 8.507059e+37
    %v1977 = vand.u32 %v1950, 2147483648
    %v1978 = vor.u32 1.1754944e-38, %v1977
    %v1979 = vsel %vm1976, %v1978, %v1974
    %v1980 = vmul.f32 %v1944, %v1979
    %1981 = vst.msk [vmem:[#allocation2] sm:$0xff] %vm258, %v1965
    %1982 = vst.msk [vmem:[#allocation2 + $0x8] sm:$0xff] %vm258, %v1980
    // Predicated region
    $region38: #{decoder_forward.1} parent=1 // pred_check
      _
    $region39: #{decoder_forward.1} parent=1 // pred_check_branch
      %1984 = sbr.rel (0) target = $region41
    $region40: #{decoder_forward.1} parent=1 // pred_region
      %1986 = vsyncadd [#allocation3], 0
      %s1987 = sshll.u32 [#allocation2], 4
      %s1988 = int_to_ptr.vmem [resolvable:$true] %s1987
      %s1989 = sshll.u32 %s9, 4
      %s1990 = int_to_ptr.hbm [resolvable:$true] %s1989
      %1995 = dma.vmem_to_hbm [thread:$0]  %s1988, 256, %s1990, [#allocation3], 128, 128, 8
    $region41: #{decoder_forward.1} parent=1 // pred_fallthru
      _
    // Predicated region
    $region42: #{decoder_forward.1} parent=1 // pred_check
      _
    $region43: #{decoder_forward.1} parent=1 // pred_check_branch
      %1997 = sbr.rel (0) target = $region45
    $region44: #{decoder_forward.1} parent=1 // pred_region
      %1999 = dma.done [#allocation3], 256
    $region45: #{decoder_forward.1} parent=1 // pred_fallthru
      _
    %2000 = vsyncpa [#allocation3], 1

</llo_original>
